<compile_context>
chip_gen: v5e
topology: v5e:2x2
jax: 0.10.0
libtpu: 0.0.40
codegen_flags: <defaults>
</compile_context>

<pallas_src>
import math
import functools

import jax
import jax.numpy as jnp
from jax import lax
from jax.experimental import pallas as pl
from jax.experimental.pallas import tpu as pltpu


def positional_encoding(shape):
    """Channel-wise positional encoding for 2D data. Returns (B, 2, H, W)."""
    b, c, h, w = shape
    hs = (jnp.arange(h, dtype=jnp.float32) / h - 0.5)[None, None, :, None]
    ws = (jnp.arange(w, dtype=jnp.float32) / w - 0.5)[None, None, None, :]
    zeros = jnp.zeros((b, 1, h, w), dtype=jnp.float32)
    return jnp.concatenate((hs + zeros, ws + zeros), axis=1)


def _flash_attn_kernel(xq_ref, xk_ref, wq_ref, bq_ref, wkv_ref, bkv_ref,
                       o_ref, m_ref, l_ref, acc_ref, *, kc):
    """One (batch, q-tile, kv-tile) grid step.

    xq_ref : (1, T, Cin2)   query-side pixels (channels last, incl. pos-enc)
    xk_ref : (1, T, Cin2)   key/value-side pixels
    wq_ref : (Cin2, kc)     query weights (scale pre-folded)
    bq_ref : (1, kc)
    wkv_ref: (Cin2, kc+vc)  fused key|value weights
    bkv_ref: (1, kc+vc)
    o_ref  : (1, vc, T)     lane-dense (channels, sequence-tile) output block
    m/l/acc: online-softmax scratch, persistent across the kv axis
    """
    qi = pl.program_id(1)
    ki = pl.program_id(2)

    @pl.when(ki == 0)
    def _init():
        m_ref[...] = jnp.full_like(m_ref, -1e30)
        l_ref[...] = jnp.zeros_like(l_ref)
        acc_ref[...] = jnp.zeros_like(acc_ref)

    # Strictly-causal mask => kv tiles above the diagonal contribute nothing.
    @pl.when(ki <= qi)
    def _compute():
        xq = xq_ref[0]                                        # (T, Cin2) f32
        xk = xk_ref[0]                                        # (T, Cin2) f32

        # 1x1 convs == matmuls over the channel axis (scale folded into wq/bq).
        q = jnp.dot(xq, wq_ref[...],
                    preferred_element_type=jnp.float32) + bq_ref[...]
        kv = jnp.dot(xk, wkv_ref[...],
                     preferred_element_type=jnp.float32) + bkv_ref[...]
        k = kv[:, :kc]
        v = kv[:, kc:]

        # scores for this tile pair: q @ k^T  -> (T, T) f32
        s = lax.dot_general(q, k, (((1,), (1,)), ((), ())),
                            preferred_element_type=jnp.float32)

        m_prev = m_ref[...]                                    # (T, 1)
        m_new = jnp.maximum(m_prev, jnp.max(s, axis=-1, keepdims=True))
        alpha = jnp.exp(m_prev - m_new)

        p = jnp.exp(s - m_new)
        # Single mask pass: keep iff global_col < global_row.  Off-diagonal
        # visited tiles (ki < qi) keep everything; the predicate only bites on
        # the diagonal tile (and zeroes the fully-masked global row 0).
        tq, tk = s.shape
        row = lax.broadcasted_iota(jnp.int32, (tq, tk), 0)
        col = lax.broadcasted_iota(jnp.int32, (tq, tk), 1)
        p = jnp.where(col < row + (qi - ki) * tq, p, 0.0)

        l_ref[...] = alpha * l_ref[...] + jnp.sum(p, axis=-1, keepdims=True)
        acc_ref[...] = alpha * acc_ref[...] + jnp.dot(
            p.astype(jnp.bfloat16), v.astype(jnp.bfloat16),
            preferred_element_type=jnp.float32)
        m_ref[...] = m_new

    @pl.when(ki == pl.num_programs(2) - 1)
    def _finalize():
        # Fully-masked rows (global row 0) have l == 0 and acc == 0 -> output 0,
        # matching the PyTorch masked_fill(-inf) -> softmax -> masked_fill(0).
        inv = pl.reciprocal(jnp.maximum(l_ref[...], 1e-30), approx=True)
        o_ref[0] = (acc_ref[...] * inv).T.astype(o_ref.dtype)   # (vc, T)


def _pick_tile(s, pref):
    if s <= pref:
        return s
    t = pref
    while s % t != 0:
        t //= 2
    if t % 128 != 0:
        # TODO(synk): H*W with no >=128 tile divisor -> fall back to one
        # untiled sequence block (still correct, just less pipelined).
        return s
    return t


def attention_block_forward(x, params, *, tile=256):
    """x: (B, C, H, W) float32 (NCHW, like PyTorch). Returns (B, Vc, H, W)."""
    b, c, h, w = x.shape
    s = h * w

    # positional encoding + channel concat + NHWC flatten (plain JAX glue)
    pe = positional_encoding(x.shape)
    x_cat = jnp.concatenate((x, pe), axis=1)                   # (B, C+2, H, W)
    cin2 = x_cat.shape[1]
    x_flat = jnp.transpose(x_cat, (0, 2, 3, 1)).reshape(b, s, cin2)

    kc = params["wq"].shape[0]
    vc = params["wv"].shape[0]
    scale = 1.0 / math.sqrt(c)                                 # original C, not C+2

    # conv weights (out, in, 1, 1) -> matmul weights (in, out); fold scale into q
    wq = params["wq"].reshape(kc, cin2).T * scale
    bq = (params["bq"] * scale)[None, :]
    wk = params["wk"].reshape(kc, cin2).T
    wv = params["wv"].reshape(vc, cin2).T
    wkv = jnp.concatenate([wk, wv], axis=1)                    # (Cin2, kc+vc)
    bkv = jnp.concatenate([params["bk"], params["bv"]])[None, :]

    t = _pick_tile(s, tile)
    n = s // t

    out_t = pl.pallas_call(
        functools.partial(_flash_attn_kernel, kc=kc),
        out_shape=jax.ShapeDtypeStruct((b, vc, s), jnp.float32),
        grid_spec=pltpu.PrefetchScalarGridSpec(
            num_scalar_prefetch=0,
            grid=(b, n, n),
            in_specs=[
                # query-side x tile
                pl.BlockSpec((1, t, cin2), lambda bi, qi, ki: (bi, qi, 0)),
                # key/value-side x tile; clamp to the diagonal so skipped
                # (ki > qi) steps never trigger a fresh DMA
                pl.BlockSpec((1, t, cin2),
                             lambda bi, qi, ki: (bi, jnp.minimum(ki, qi), 0)),
                pl.BlockSpec((cin2, kc), lambda bi, qi, ki: (0, 0)),
                pl.BlockSpec((1, kc), lambda bi, qi, ki: (0, 0)),
                pl.BlockSpec((cin2, kc + vc), lambda bi, qi, ki: (0, 0)),
                pl.BlockSpec((1, kc + vc), lambda bi, qi, ki: (0, 0)),
            ],
            out_specs=pl.BlockSpec((1, vc, t), lambda bi, qi, ki: (bi, 0, qi)),
            scratch_shapes=[
                pltpu.VMEM((t, 1), jnp.float32),    # m
                pltpu.VMEM((t, 1), jnp.float32),    # l
                pltpu.VMEM((t, vc), jnp.float32),   # acc
            ],
        ),
        compiler_params=pltpu.CompilerParams(
            dimension_semantics=("parallel", "parallel", "arbitrary")),
    )(x_flat, x_flat, wq, bq, wkv, bkv)

    # kernel already produced channels-first (B, vc, S) -> just reshape to NCHW
    return out_t.reshape(b, vc, h, w)


def _reference_forward(x, params):
    """Pure-JAX reference mirroring the PyTorch forward."""
    b, c, h, w = x.shape
    s = h * w
    pe = positional_encoding(x.shape)
    x_cat = jnp.concatenate((x, pe), axis=1)
    cin2 = x_cat.shape[1]
    xf = jnp.transpose(x_cat, (0, 2, 3, 1)).reshape(b, s, cin2)
    q = xf @ params["wq"].reshape(-1, cin2).T + params["bq"]
    k = xf @ params["wk"].reshape(-1, cin2).T + params["bk"]
    v = xf @ params["wv"].reshape(-1, cin2).T + params["bv"]
    att = jnp.einsum("bqc,bkc->bqk", q, k,
                     precision=lax.Precision.HIGHEST) / math.sqrt(c)
    mask = jnp.tril(jnp.ones((s, s)), k=-1) > 0
    att = jnp.where(mask, att, -jnp.inf)
    att = jax.nn.softmax(att, axis=-1)
    att = jnp.where(mask, att, 0.0)
    att = jnp.nan_to_num(att)   # fully-masked row 0 -> zeros (matches PyTorch)
    out = jnp.einsum("bqk,bkd->bqd", att, v, precision=lax.Precision.HIGHEST)
    return jnp.transpose(out, (0, 2, 1)).reshape(b, -1, h, w)


if __name__ == "__main__":
    # small shapes consistent with the module's forward (S = H*W = 256)
    B, C, H, W = 2, 6, 16, 16        # in_channels=6
    KEY_CH, VAL_CH = 8, 16           # key_channels=8, value_channels=16
    CIN2 = C + 2

    key = jax.random.PRNGKey(0)
    kx, kq, kk, kv, kbq, kbk, kbv = jax.random.split(key, 7)

    x = jax.random.normal(kx, (B, C, H, W), dtype=jnp.float32)

    bound = 1.0 / math.sqrt(CIN2)    # 1x1-conv fan-in
    params = {
        "wq": jax.random.uniform(kq, (KEY_CH, CIN2, 1, 1), jnp.float32, -bound, bound),
        "wk": jax.random.uniform(kk, (KEY_CH, CIN2, 1, 1), jnp.float32, -bound, bound),
        "wv": jax.random.uniform(kv, (VAL_CH, CIN2, 1, 1), jnp.float32, -bound, bound),
        "bq": jax.random.uniform(kbq, (KEY_CH,), jnp.float32, -bound, bound),
        "bk": jax.random.uniform(kbk, (KEY_CH,), jnp.float32, -bound, bound),
        "bv": jax.random.uniform(kbv, (VAL_CH,), jnp.float32, -bound, bound),
    }

    ref = jax.block_until_ready(_reference_forward(x, params))

    # multi-tile path: tile=128 -> grid (B, 2, 2), exercises causal tile skipping
    out_tiled = jax.block_until_ready(attention_block_forward(x, params, tile=128))
    assert out_tiled.shape == (B, VAL_CH, H, W), out_tiled.shape
    err_tiled = float(jnp.max(jnp.abs(out_tiled - ref)))
    assert jnp.allclose(out_tiled, ref, atol=3e-2, rtol=3e-2), err_tiled

    # single-tile path: the whole sequence in one block per batch element
    out_full = jax.block_until_ready(attention_block_forward(x, params, tile=256))
    err_full = float(jnp.max(jnp.abs(out_full - ref)))
    assert jnp.allclose(out_full, ref, atol=3e-2, rtol=3e-2), err_full

    print("KERNEL_OK")
</pallas_src>

<mosaic_0001>
module attributes {stable_mosaic.version = 11 : i64} {
  func.func @_flash_attn_kernel(%arg0: i32, %arg1: i32, %arg2: i32, %arg3: memref<1x128x8xf32, #tpu.memory_space<vmem>>, %arg4: memref<1x128x8xf32, #tpu.memory_space<vmem>>, %arg5: memref<8x8xf32, #tpu.memory_space<vmem>>, %arg6: memref<1x8xf32, #tpu.memory_space<vmem>>, %arg7: memref<8x24xf32, #tpu.memory_space<vmem>>, %arg8: memref<1x24xf32, #tpu.memory_space<vmem>>, %arg9: memref<1x16x128xf32, #tpu.memory_space<vmem>>, %arg10: memref<128x1xf32, #tpu.memory_space<vmem>>, %arg11: memref<128x1xf32, #tpu.memory_space<vmem>>, %arg12: memref<128x16xf32, #tpu.memory_space<vmem>>) attributes {dimension_semantics = [#tpu.dimension_semantics<parallel>, #tpu.dimension_semantics<parallel>, #tpu.dimension_semantics<arbitrary>], iteration_bounds = array<i64: 2, 2, 2>, scalar_prefetch = 0 : i64, scratch_operands = 3 : i64, tpu.core_type = #tpu.core_type<tc>, window_params = [{transform_indices = @transform_0, window_bounds = array<i64: 1, 128, 8>}, {transform_indices = @transform_1, window_bounds = array<i64: 1, 128, 8>}, {pipeline_mode = #tpu.pipeline_mode<synchronous>, transform_indices = @transform_2, window_bounds = array<i64: 8, 8>}, {pipeline_mode = #tpu.pipeline_mode<synchronous>, transform_indices = @transform_3, window_bounds = array<i64: 1, 8>}, {pipeline_mode = #tpu.pipeline_mode<synchronous>, transform_indices = @transform_4, window_bounds = array<i64: 8, 24>}, {pipeline_mode = #tpu.pipeline_mode<synchronous>, transform_indices = @transform_5, window_bounds = array<i64: 1, 24>}, {transform_indices = @transform_6, window_bounds = array<i64: 1, 16, 128>}]} {
    %c0_i32 = arith.constant 0 : i32
    %0 = arith.cmpi eq, %arg2, %c0_i32 : i32
    %1 = arith.extui %0 : i1 to i32
    %c0_i32_0 = arith.constant 0 : i32
    %2 = arith.cmpi ne, %1, %c0_i32_0 : i32
    scf.if %2 {
      %cst = arith.constant -1.000000e+30 : f32
      %9 = vector.broadcast %cst : f32 to vector<128x1xf32>
      %c0 = arith.constant 0 : index
      %c0_3 = arith.constant 0 : index
      %10 = vector.load %arg10[%c0, %c0_3] : memref<128x1xf32, #tpu.memory_space<vmem>>, vector<128x1xf32>
      tpu.vector_store %arg10[%c0, %c0_3], %9 {strides = array<i32>} : memref<128x1xf32, #tpu.memory_space<vmem>>, vector<128x1xf32>,
      %cst_4 = arith.constant 0.000000e+00 : f32
      %11 = vector.broadcast %cst_4 : f32 to vector<128x1xf32>
      %c0_5 = arith.constant 0 : index
      %c0_6 = arith.constant 0 : index
      %12 = vector.load %arg11[%c0_5, %c0_6] : memref<128x1xf32, #tpu.memory_space<vmem>>, vector<128x1xf32>
      tpu.vector_store %arg11[%c0_5, %c0_6], %11 {strides = array<i32>} : memref<128x1xf32, #tpu.memory_space<vmem>>, vector<128x1xf32>,
      %cst_7 = arith.constant 0.000000e+00 : f32
      %13 = vector.broadcast %cst_7 : f32 to vector<128x16xf32>
      %c0_8 = arith.constant 0 : index
      %c0_9 = arith.constant 0 : index
      %14 = vector.load %arg12[%c0_8, %c0_9] : memref<128x16xf32, #tpu.memory_space<vmem>>, vector<128x16xf32>
      tpu.vector_store %arg12[%c0_8, %c0_9], %13 {strides = array<i32>} : memref<128x16xf32, #tpu.memory_space<vmem>>, vector<128x16xf32>,
    } else {
    }
    %3 = arith.cmpi sle, %arg2, %arg1 : i32
    %4 = arith.extui %3 : i1 to i32
    %c0_i32_1 = arith.constant 0 : i32
    %5 = arith.cmpi ne, %4, %c0_i32_1 : i32
    scf.if %5 {
      %c0 = arith.constant 0 : index
      %c0_3 = arith.constant 0 : index
      %c0_4 = arith.constant 0 : index
      %9 = vector.load %arg3[%c0, %c0_3, %c0_4] : memref<1x128x8xf32, #tpu.memory_space<vmem>>, vector<1x128x8xf32>
      %10 = vector.shape_cast %9 : vector<1x128x8xf32> to vector<128x8xf32>
      %c0_5 = arith.constant 0 : index
      %c0_6 = arith.constant 0 : index
      %c0_7 = arith.constant 0 : index
      %11 = vector.load %arg4[%c0_5, %c0_6, %c0_7] : memref<1x128x8xf32, #tpu.memory_space<vmem>>, vector<1x128x8xf32>
      %12 = vector.shape_cast %11 : vector<1x128x8xf32> to vector<128x8xf32>
      %c0_8 = arith.constant 0 : index
      %c0_9 = arith.constant 0 : index
      %13 = vector.load %arg5[%c0_8, %c0_9] : memref<8x8xf32, #tpu.memory_space<vmem>>, vector<8x8xf32>
      %cst = arith.constant dense<0.000000e+00> : vector<128x8xf32>
      %14 = tpu.matmul %10, %13, %cst {dimension_numbers = #tpu.dot_dimension_numbers<[1], [0], [0], [1], [0, 0, 1, 1], [], []>} : vector<128x8xf32>, vector<8x8xf32>, vector<128x8xf32> -> vector<128x8xf32>
      %c0_10 = arith.constant 0 : index
      %c0_11 = arith.constant 0 : index
      %15 = vector.load %arg6[%c0_10, %c0_11] : memref<1x8xf32, #tpu.memory_space<vmem>>, vector<1x8xf32>
      %16 = vector.broadcast %15 : vector<1x8xf32> to vector<128x8xf32>
      %17 = arith.addf %14, %16 : vector<128x8xf32>
      %c0_12 = arith.constant 0 : index
      %c0_13 = arith.constant 0 : index
      %18 = vector.load %arg7[%c0_12, %c0_13] : memref<8x24xf32, #tpu.memory_space<vmem>>, vector<8x24xf32>
      %cst_14 = arith.constant dense<0.000000e+00> : vector<128x24xf32>
      %19 = tpu.matmul %12, %18, %cst_14 {dimension_numbers = #tpu.dot_dimension_numbers<[1], [0], [0], [1], [0, 0, 1, 1], [], []>} : vector<128x8xf32>, vector<8x24xf32>, vector<128x24xf32> -> vector<128x24xf32>
      %c0_15 = arith.constant 0 : index
      %c0_16 = arith.constant 0 : index
      %20 = vector.load %arg8[%c0_15, %c0_16] : memref<1x24xf32, #tpu.memory_space<vmem>>, vector<1x24xf32>
      %21 = vector.broadcast %20 : vector<1x24xf32> to vector<128x24xf32>
      %22 = arith.addf %19, %21 : vector<128x24xf32>
      %23 = vector.extract_strided_slice %22 {offsets = [0, 0], sizes = [128, 8], strides = [1, 1]} : vector<128x24xf32> to vector<128x8xf32>
      %24 = vector.extract_strided_slice %22 {offsets = [0, 8], sizes = [128, 16], strides = [1, 1]} : vector<128x24xf32> to vector<128x16xf32>
      %cst_17 = arith.constant dense<0.000000e+00> : vector<128x128xf32>
      %25 = tpu.matmul %17, %23, %cst_17 {dimension_numbers = #tpu.dot_dimension_numbers<[1], [1], [0], [0], [0, 0, 1, 0], [], []>} : vector<128x8xf32>, vector<128x8xf32>, vector<128x128xf32> -> vector<128x128xf32>
      %c0_18 = arith.constant 0 : index
      %c0_19 = arith.constant 0 : index
      %26 = vector.load %arg10[%c0_18, %c0_19] : memref<128x1xf32, #tpu.memory_space<vmem>>, vector<128x1xf32>
      %cst_20 = arith.constant dense<0xFF800000> : vector<128xf32>
      %27 = vector.multi_reduction <maximumf>, %25, %cst_20 [1] : vector<128x128xf32> to vector<128xf32>
      %28 = vector.shape_cast %27 : vector<128xf32> to vector<128x1xf32>
      %29 = arith.maximumf %26, %28 : vector<128x1xf32>
      %30 = arith.subf %26, %29 : vector<128x1xf32>
      %31 = math.exp %30 : vector<128x1xf32>
      %32 = vector.broadcast %29 : vector<128x1xf32> to vector<128x128xf32>
      %33 = arith.subf %25, %32 : vector<128x128xf32>
      %34 = math.exp %33 : vector<128x128xf32>
      %35 = tpu.iota {dimensions = array<i32: 0>} : vector<128x128xi32>
      %36 = tpu.iota {dimensions = array<i32: 1>} : vector<128x128xi32>
      %37 = arith.subi %arg1, %arg2 : i32
      %c128_i32 = arith.constant 128 : i32
      %38 = arith.muli %37, %c128_i32 : i32
      %39 = vector.broadcast %38 : i32 to vector<128x128xi32>
      %40 = arith.addi %35, %39 : vector<128x128xi32>
      %41 = arith.cmpi slt, %36, %40 : vector<128x128xi32>
      %cst_21 = arith.constant 0.000000e+00 : f32
      %42 = vector.broadcast %cst_21 : f32 to vector<128x128xf32>
      %43 = arith.select %41, %34, %42 : vector<128x128xi1>, vector<128x128xf32>
      %c0_22 = arith.constant 0 : index
      %c0_23 = arith.constant 0 : index
      %44 = vector.load %arg11[%c0_22, %c0_23] : memref<128x1xf32, #tpu.memory_space<vmem>>, vector<128x1xf32>
      %45 = arith.mulf %31, %44 : vector<128x1xf32>
      %cst_24 = arith.constant dense<0.000000e+00> : vector<128xf32>
      %46 = vector.multi_reduction <add>, %43, %cst_24 [1] : vector<128x128xf32> to vector<128xf32>
      %47 = vector.shape_cast %46 : vector<128xf32> to vector<128x1xf32>
      %48 = arith.addf %45, %47 : vector<128x1xf32>
      %c0_25 = arith.constant 0 : index
      %c0_26 = arith.constant 0 : index
      %49 = vector.load %arg11[%c0_25, %c0_26] : memref<128x1xf32, #tpu.memory_space<vmem>>, vector<128x1xf32>
      tpu.vector_store %arg11[%c0_25, %c0_26], %48 {strides = array<i32>} : memref<128x1xf32, #tpu.memory_space<vmem>>, vector<128x1xf32>,
      %c0_27 = arith.constant 0 : index
      %c0_28 = arith.constant 0 : index
      %50 = vector.load %arg12[%c0_27, %c0_28] : memref<128x16xf32, #tpu.memory_space<vmem>>, vector<128x16xf32>
      %51 = vector.broadcast %31 : vector<128x1xf32> to vector<128x16xf32>
      %52 = arith.mulf %51, %50 : vector<128x16xf32>
      %53 = arith.truncf %43 : vector<128x128xf32> to vector<128x128xbf16>
      %54 = arith.truncf %24 : vector<128x16xf32> to vector<128x16xbf16>
      %cst_29 = arith.constant dense<0.000000e+00> : vector<128x16xf32>
      %55 = tpu.matmul %53, %54, %cst_29 {dimension_numbers = #tpu.dot_dimension_numbers<[1], [0], [0], [1], [0, 0, 1, 1], [], []>} : vector<128x128xbf16>, vector<128x16xbf16>, vector<128x16xf32> -> vector<128x16xf32>
      %56 = arith.addf %52, %55 : vector<128x16xf32>
      %c0_30 = arith.constant 0 : index
      %c0_31 = arith.constant 0 : index
      %57 = vector.load %arg12[%c0_30, %c0_31] : memref<128x16xf32, #tpu.memory_space<vmem>>, vector<128x16xf32>
      tpu.vector_store %arg12[%c0_30, %c0_31], %56 {strides = array<i32>} : memref<128x16xf32, #tpu.memory_space<vmem>>, vector<128x16xf32>,
      %c0_32 = arith.constant 0 : index
      %c0_33 = arith.constant 0 : index
      %58 = vector.load %arg10[%c0_32, %c0_33] : memref<128x1xf32, #tpu.memory_space<vmem>>, vector<128x1xf32>
      tpu.vector_store %arg10[%c0_32, %c0_33], %29 {strides = array<i32>} : memref<128x1xf32, #tpu.memory_space<vmem>>, vector<128x1xf32>,
    } else {
    }
    %c1_i32 = arith.constant 1 : i32
    %6 = arith.cmpi eq, %arg2, %c1_i32 : i32
    %7 = arith.extui %6 : i1 to i32
    %c0_i32_2 = arith.constant 0 : i32
    %8 = arith.cmpi ne, %7, %c0_i32_2 : i32
    scf.if %8 {
      %c0 = arith.constant 0 : index
      %c0_3 = arith.constant 0 : index
      %9 = vector.load %arg11[%c0, %c0_3] : memref<128x1xf32, #tpu.memory_space<vmem>>, vector<128x1xf32>
      %cst = arith.constant 1.000000e-30 : f32
      %10 = vector.broadcast %cst : f32 to vector<128x1xf32>
      %11 = arith.maximumf %9, %10 : vector<128x1xf32>
      %12 = tpu.reciprocal %11 {approx = true} : vector<128x1xf32> -> vector<128x1xf32>
      %c0_4 = arith.constant 0 : index
      %c0_5 = arith.constant 0 : index
      %13 = vector.load %arg12[%c0_4, %c0_5] : memref<128x16xf32, #tpu.memory_space<vmem>>, vector<128x16xf32>
      %14 = vector.broadcast %12 : vector<128x1xf32> to vector<128x16xf32>
      %15 = arith.mulf %13, %14 : vector<128x16xf32>
      %16 = tpu.transpose %15, [1, 0] : vector<128x16xf32> -> vector<16x128xf32>
      %c0_6 = arith.constant 0 : index
      %c0_7 = arith.constant 0 : index
      %c0_8 = arith.constant 0 : index
      %17 = vector.load %arg9[%c0_6, %c0_7, %c0_8] : memref<1x16x128xf32, #tpu.memory_space<vmem>>, vector<1x16x128xf32>
      %18 = vector.shape_cast %17 : vector<1x16x128xf32> to vector<16x128xf32>
      %19 = vector.shape_cast %16 : vector<16x128xf32> to vector<1x16x128xf32>
      tpu.vector_store %arg9[%c0_6, %c0_7, %c0_8], %19 {strides = array<i32>} : memref<1x16x128xf32, #tpu.memory_space<vmem>>, vector<1x16x128xf32>,
    } else {
    }
    return
  }
  func.func @transform_0(%arg0: i32, %arg1: i32, %arg2: i32) -> (i32, i32, i32) {
    %c0_i32 = arith.constant 0 : i32
    %c0_i32_0 = arith.constant 0 : i32
    return %arg0, %arg1, %c0_i32 : i32, i32, i32
  }
  func.func @transform_1(%arg0: i32, %arg1: i32, %arg2: i32) -> (i32, i32, i32) {
    %0 = arith.minsi %arg2, %arg1 : i32
    %c0_i32 = arith.constant 0 : i32
    %c0_i32_0 = arith.constant 0 : i32
    return %arg0, %0, %c0_i32 : i32, i32, i32
  }
  func.func @transform_2(%arg0: i32, %arg1: i32, %arg2: i32) -> (i32, i32) {
    %c0_i32 = arith.constant 0 : i32
    %c0_i32_0 = arith.constant 0 : i32
    %c0_i32_1 = arith.constant 0 : i32
    return %c0_i32, %c0_i32_0 : i32, i32
  }
  func.func @transform_3(%arg0: i32, %arg1: i32, %arg2: i32) -> (i32, i32) {
    %c0_i32 = arith.constant 0 : i32
    %c0_i32_0 = arith.constant 0 : i32
    %c0_i32_1 = arith.constant 0 : i32
    return %c0_i32, %c0_i32_0 : i32, i32
  }
  func.func @transform_4(%arg0: i32, %arg1: i32, %arg2: i32) -> (i32, i32) {
    %c0_i32 = arith.constant 0 : i32
    %c0_i32_0 = arith.constant 0 : i32
    %c0_i32_1 = arith.constant 0 : i32
    return %c0_i32, %c0_i32_0 : i32, i32
  }
  func.func @transform_5(%arg0: i32, %arg1: i32, %arg2: i32) -> (i32, i32) {
    %c0_i32 = arith.constant 0 : i32
    %c0_i32_0 = arith.constant 0 : i32
    %c0_i32_1 = arith.constant 0 : i32
    return %c0_i32, %c0_i32_0 : i32, i32
  }
  func.func @transform_6(%arg0: i32, %arg1: i32, %arg2: i32) -> (i32, i32, i32) {
    %c0_i32 = arith.constant 0 : i32
    %c0_i32_0 = arith.constant 0 : i32
    return %arg0, %c0_i32, %arg1 : i32, i32, i32
  }
}

</mosaic_0001>

<llo_original>
// kernel: tpu_custom_call.1
$region0: #{tpu_custom_call.1}
  #allocation0 [shape = 'u32[]', space=smem, size = 0x4, offset = 0x4, fixed_abs, tag = 'smem constant byte address 0x4 - core index']
  #allocation1 [shape = 'u32[72,128]{1,0:T(1,128)}', space=vmem, size = 0x9000, scoped, tag = 'internal scratch']
  #allocation2 [shape = 'f32[128,1]{1,0:T(8,128)}', space=vmem, size = 0x10000, scoped, tag = 'scratch operand']
  #allocation3 [shape = 'f32[128,1]{1,0:T(8,128)}', space=vmem, size = 0x10000, scoped, tag = 'scratch operand']
  #allocation4 [shape = 'f32[128,16]{1,0:T(8,128)}', space=vmem, size = 0x10000, scoped, tag = 'scratch operand']
  %s0 = inlined_call_operand.vmem [shape: f32[2,256,8], index: 0, kind: input, shape index: {}]
  %s1 = inlined_call_operand.vmem [shape: f32[2,256,8], index: 1, kind: input, shape index: {}]
  %s2 = inlined_call_operand.vmem [shape: f32[8,8], index: 2, kind: input, shape index: {}]
  %s3 = inlined_call_operand.vmem [shape: f32[1,8], index: 3, kind: input, shape index: {}]
  %s4 = inlined_call_operand.vmem [shape: f32[8,24], index: 4, kind: input, shape index: {}]
  %s5 = inlined_call_operand.vmem [shape: f32[1,24], index: 5, kind: input, shape index: {}]
  %s6 = inlined_call_operand.hbm [shape: f32[2,16,256], index: 6, kind: output, shape index: {}]
  %s7 = sld [smem:[#allocation0]]
  $region69: #{tpu_custom_call.1} parent=0
    _
  %s9 = ssub.s32 1, %s7
  %s10 = scalar_select 0, %s9, %s7
  $region1: #{tpu_custom_call.1} parent=0
    #allocation5 [shape = 'u8[16384]{0}', space=vmem, size = 0x4000, scoped, tag = 'output window, operand 0']
    #allocation6 [shape = 's32[2]{0}', space=sflag, size = 0x8, scoped, tag = 'scoped memory for tpu_custom_call.1']
    %11 = vsyncpa [#allocation6], 0
    %s12 = scalar_lea.sflag [#allocation6], 1
    %13 = vsyncpa %s12, 0
    loop: start=0, step=1, limit=10
    $region2: #{tpu_custom_call.1} parent=1 // loop_pre_header
      _
    $region3: #{tpu_custom_call.1} parent=1 // loop_header
      %s15 = sphi 0, %s19
      %p16 = scmp.ge.s32.totalorder %s15, 10
      %s22 = sphi 0, %s41
      %s23 = sphi 0, %s37
      %s24 = sphi 0, %s33
      %s25 = sphi 0, %s22
      %s26 = sphi 0, %s23
      %s27 = sphi 0, %s24
      %s28 = sphi 0, %s25
      %s29 = sphi 0, %s26
      %s30 = sphi 0, %s27
      %s46 = sphi 0, %s48
      %s49 = sphi 0, %s46
      %s50 = sphi 0, %s49
      %s66 = sphi 0, %s50
      %s78 = sphi 0, %s80
      %s81 = sphi 0, %s78
      %s82 = sphi 0, %s81
      %s98 = sphi 0, %s82
      %s102 = sphi 0, %s102
      %s104 = sphi 0, %s102
      %s105 = sphi 0, %s104
      %s119 = sphi 0, %s105
      %s123 = sphi 0, %s123
      %s125 = sphi 0, %s123
      %s126 = sphi 0, %s125
      %s140 = sphi 0, %s126
      %s144 = sphi 0, %s144
      %s146 = sphi 0, %s144
      %s147 = sphi 0, %s146
      %s161 = sphi 0, %s147
      %s165 = sphi 0, %s165
      %s167 = sphi 0, %s165
      %s168 = sphi 0, %s167
      %s182 = sphi 0, %s168
      %s190 = sphi 0, %s192
      %s193 = sphi 0, %s190
      %s194 = sphi 0, %s193
      %s210 = sphi 0, %s194
    $region4: #{tpu_custom_call.1} parent=1 // loop_header_branch
      %18 = sbr.rel (%p16) target = $region8
    $region5: #{tpu_custom_call.1} parent=1 // loop_body
      %s20 = ssub.s32 %s15, 1
      %s21 = ssub.s32 %s15, 2
      %s31 = sadd.s32 1, %s24
      %p32 = scmp.ge.s32.totalorder %s31, 2
      %s33 = scalar_select %p32, 0, %s31
      %s34 = sadd.s32 1, %s23
      %s35 = scalar_select %p32, %s34, %s23
      %p36 = scmp.ge.s32.totalorder %s35, 2
      %s37 = scalar_select %p36, 0, %s35
      %s38 = sadd.s32 1, %s22
      %s39 = scalar_select %p36, %s38, %s22
      %p40 = scmp.ge.s32.totalorder %s39, 2
      %s41 = scalar_select %p40, 0, %s39
      %s42 = ssub.s32 %s22, %s41
      %s43 = ssub.s32 %s23, %s37
      %s44 = sor.u32 %s42, %s43
      %p45 = scmp.eq.s32.totalorder %s44, 0
      %s47 = sadd.s32 %s46, 1
      %s48 = scalar_select %p45, %s46, %s47
      %p51 = pneg %p45
      %p52 = scmp.eq.s32.totalorder %s15, 7
      %p53 = por %p51, %p52
      %p54 = scmp.ne.s32.totalorder %s46, %s49
      %p55 = scmp.eq.s32.totalorder %s15, 0
      %p56 = por %p54, %p55
      %p57 = scmp.ne.s32.totalorder %s46, %s49
      %p58 = scmp.eq.s32.totalorder %s20, 7
      %p59 = por %p57, %p58
      %p60 = scmp.ne.s32.totalorder %s49, %s50
      %p61 = scmp.eq.s32.totalorder %s20, 0
      %p62 = por %p60, %p61
      %p63 = scmp.ne.s32.totalorder %s49, %s50
      %p64 = scmp.eq.s32.totalorder %s21, 7
      %p65 = por %p63, %p64
      %p67 = scmp.ne.s32.totalorder %s50, %s66
      %p68 = scmp.eq.s32.totalorder %s21, 0
      %p69 = por %p67, %p68
      %p70 = scmp.lt.s32.totalorder %s24, %s23
      %s71 = scalar_select %p70, %s24, %s23
      %p72 = scmp.lt.s32.totalorder %s33, %s37
      %s73 = scalar_select %p72, %s33, %s37
      %s74 = ssub.s32 %s22, %s41
      %s75 = ssub.s32 %s71, %s73
      %s76 = sor.u32 %s74, %s75
      %p77 = scmp.eq.s32.totalorder %s76, 0
      %s79 = sadd.s32 %s78, 1
      %s80 = scalar_select %p77, %s78, %s79
      %p83 = pneg %p77
      %p84 = scmp.eq.s32.totalorder %s15, 7
      %p85 = por %p83, %p84
      %p86 = scmp.ne.s32.totalorder %s78, %s81
      %p87 = scmp.eq.s32.totalorder %s15, 0
      %p88 = por %p86, %p87
      %p89 = scmp.ne.s32.totalorder %s78, %s81
      %p90 = scmp.eq.s32.totalorder %s20, 7
      %p91 = por %p89, %p90
      %p92 = scmp.ne.s32.totalorder %s81, %s82
      %p93 = scmp.eq.s32.totalorder %s20, 0
      %p94 = por %p92, %p93
      %p95 = scmp.ne.s32.totalorder %s81, %s82
      %p96 = scmp.eq.s32.totalorder %s21, 7
      %p97 = por %p95, %p96
      %p99 = scmp.ne.s32.totalorder %s82, %s98
      %p100 = scmp.eq.s32.totalorder %s21, 0
      %p101 = por %p99, %p100
      %s103 = sadd.s32 %s102, 1
      %p106 = scmp.eq.s32.totalorder %s15, 7
      %p107 = scmp.ne.s32.totalorder %s102, %s104
      %p108 = scmp.eq.s32.totalorder %s15, 0
      %p109 = por %p107, %p108
      %p110 = scmp.ne.s32.totalorder %s102, %s104
      %p111 = scmp.eq.s32.totalorder %s20, 7
      %p112 = por %p110, %p111
      %p113 = scmp.ne.s32.totalorder %s104, %s105
      %p114 = scmp.eq.s32.totalorder %s20, 0
      %p115 = por %p113, %p114
      %p116 = scmp.ne.s32.totalorder %s104, %s105
      %p117 = scmp.eq.s32.totalorder %s21, 7
      %p118 = por %p116, %p117
      %p120 = scmp.ne.s32.totalorder %s105, %s119
      %p121 = scmp.eq.s32.totalorder %s21, 0
      %p122 = por %p120, %p121
      %s124 = sadd.s32 %s123, 1
      %p127 = scmp.eq.s32.totalorder %s15, 7
      %p128 = scmp.ne.s32.totalorder %s123, %s125
      %p129 = scmp.eq.s32.totalorder %s15, 0
      %p130 = por %p128, %p129
      %p131 = scmp.ne.s32.totalorder %s123, %s125
      %p132 = scmp.eq.s32.totalorder %s20, 7
      %p133 = por %p131, %p132
      %p134 = scmp.ne.s32.totalorder %s125, %s126
      %p135 = scmp.eq.s32.totalorder %s20, 0
      %p136 = por %p134, %p135
      %p137 = scmp.ne.s32.totalorder %s125, %s126
      %p138 = scmp.eq.s32.totalorder %s21, 7
      %p139 = por %p137, %p138
      %p141 = scmp.ne.s32.totalorder %s126, %s140
      %p142 = scmp.eq.s32.totalorder %s21, 0
      %p143 = por %p141, %p142
      %s145 = sadd.s32 %s144, 1
      %p148 = scmp.eq.s32.totalorder %s15, 7
      %p149 = scmp.ne.s32.totalorder %s144, %s146
      %p150 = scmp.eq.s32.totalorder %s15, 0
      %p151 = por %p149, %p150
      %p152 = scmp.ne.s32.totalorder %s144, %s146
      %p153 = scmp.eq.s32.totalorder %s20, 7
      %p154 = por %p152, %p153
      %p155 = scmp.ne.s32.totalorder %s146, %s147
      %p156 = scmp.eq.s32.totalorder %s20, 0
      %p157 = por %p155, %p156
      %p158 = scmp.ne.s32.totalorder %s146, %s147
      %p159 = scmp.eq.s32.totalorder %s21, 7
      %p160 = por %p158, %p159
      %p162 = scmp.ne.s32.totalorder %s147, %s161
      %p163 = scmp.eq.s32.totalorder %s21, 0
      %p164 = por %p162, %p163
      %s166 = sadd.s32 %s165, 1
      %p169 = scmp.eq.s32.totalorder %s15, 7
      %p170 = scmp.ne.s32.totalorder %s165, %s167
      %p171 = scmp.eq.s32.totalorder %s15, 0
      %p172 = por %p170, %p171
      %p173 = scmp.ne.s32.totalorder %s165, %s167
      %p174 = scmp.eq.s32.totalorder %s20, 7
      %p175 = por %p173, %p174
      %p176 = scmp.ne.s32.totalorder %s167, %s168
      %p177 = scmp.eq.s32.totalorder %s20, 0
      %p178 = por %p176, %p177
      %p179 = scmp.ne.s32.totalorder %s167, %s168
      %p180 = scmp.eq.s32.totalorder %s21, 7
      %p181 = por %p179, %p180
      %p183 = scmp.ne.s32.totalorder %s168, %s182
      %p184 = scmp.eq.s32.totalorder %s21, 0
      %p185 = por %p183, %p184
      %s186 = ssub.s32 %s22, %s41
      %s187 = ssub.s32 %s23, %s37
      %s188 = sor.u32 %s186, %s187
      %p189 = scmp.eq.s32.totalorder %s188, 0
      %s191 = sadd.s32 %s190, 1
      %s192 = scalar_select %p189, %s190, %s191
      %p195 = pneg %p189
      %p196 = scmp.eq.s32.totalorder %s15, 7
      %p197 = por %p195, %p196
      %p198 = scmp.ne.s32.totalorder %s190, %s193
      %p199 = scmp.eq.s32.totalorder %s15, 0
      %p200 = por %p198, %p199
      %p201 = scmp.ne.s32.totalorder %s190, %s193
      %p202 = scmp.eq.s32.totalorder %s20, 7
      %p203 = por %p201, %p202
      %p204 = scmp.ne.s32.totalorder %s193, %s194
      %p205 = scmp.eq.s32.totalorder %s20, 0
      %p206 = por %p204, %p205
      %p207 = scmp.ne.s32.totalorder %s193, %s194
      %p208 = scmp.eq.s32.totalorder %s21, 7
      %p209 = por %p207, %p208
      %p211 = scmp.ne.s32.totalorder %s194, %s210
      %p212 = scmp.eq.s32.totalorder %s21, 0
      %p213 = por %p211, %p212
      %p214 = scmp.le.s32.totalorder 1, %s15
      %p215 = scmp.lt.s32.totalorder %s15, 9
      %p216 = pnand %p214, %p215
      %p217 = pneg %p216
      // Predicated region
      $region9: #{tpu_custom_call.1} parent=5 // pred_check
        _
      $region10: #{tpu_custom_call.1} parent=5 // pred_check_branch
        %219 = sbr.rel (%p216) target = $region12
      $region11: #{tpu_custom_call.1} parent=5 // pred_region
        %s220 = ssub.s32 %s15, 1
        // Predicated region
        $region13: #{tpu_custom_call.1} parent=11 // pred_check
          %p221 = pneg %p115
        $region14: #{tpu_custom_call.1} parent=11 // pred_check_branch
          %223 = sbr.rel (%p221) target = $region16
        $region15: #{tpu_custom_call.1} parent=11 // pred_region
          _
        $region16: #{tpu_custom_call.1} parent=11 // pred_fallthru
          _
        // Predicated region
        $region17: #{tpu_custom_call.1} parent=11 // pred_check
          %p224 = pneg %p136
        $region18: #{tpu_custom_call.1} parent=11 // pred_check_branch
          %226 = sbr.rel (%p224) target = $region20
        $region19: #{tpu_custom_call.1} parent=11 // pred_region
          _
        $region20: #{tpu_custom_call.1} parent=11 // pred_fallthru
          _
        // Predicated region
        $region21: #{tpu_custom_call.1} parent=11 // pred_check
          %p227 = pneg %p157
        $region22: #{tpu_custom_call.1} parent=11 // pred_check_branch
          %229 = sbr.rel (%p227) target = $region24
        $region23: #{tpu_custom_call.1} parent=11 // pred_region
          _
        $region24: #{tpu_custom_call.1} parent=11 // pred_fallthru
          _
        // Predicated region
        $region25: #{tpu_custom_call.1} parent=11 // pred_check
          %p230 = pneg %p178
        $region26: #{tpu_custom_call.1} parent=11 // pred_check_branch
          %232 = sbr.rel (%p230) target = $region28
        $region27: #{tpu_custom_call.1} parent=11 // pred_region
          _
        $region28: #{tpu_custom_call.1} parent=11 // pred_fallthru
          _
      $region12: #{tpu_custom_call.1} parent=5 // pred_fallthru
        _
      %p233 = scmp.lt.s32.totalorder %s15, 8
      // Predicated region
      $region29: #{tpu_custom_call.1} parent=5 // pred_check
        %p234 = pneg %p233
      $region30: #{tpu_custom_call.1} parent=5 // pred_check_branch
        %236 = sbr.rel (%p234) target = $region32
      $region31: #{tpu_custom_call.1} parent=5 // pred_region
        // Predicated region
        $region33: #{tpu_custom_call.1} parent=31 // pred_check
          %p237 = pneg %p56
        $region34: #{tpu_custom_call.1} parent=31 // pred_check_branch
          %239 = sbr.rel (%p237) target = $region36
        $region35: #{tpu_custom_call.1} parent=31 // pred_region
          %s240 = smul.u32 16, %s23
          %p241 = scmp.lt.s32.totalorder %s22, 1
          %s242 = scalar_select %p241, %s22, 1
          %p243 = scmp.lt.s32.totalorder %s240, 31
          %s244 = scalar_select %p243, %s240, 31
          %s245 = smul.addr %s242, 32
          %s246 = sadd.s32 %s244, %s245
          %s247 = smul.addr %s246, 8
          %s248 = scalar_lea.vmem %s0, %s247
          %s249 = smul.u32 16, %s23
        $region36: #{tpu_custom_call.1} parent=31 // pred_fallthru
          _
        // Predicated region
        $region37: #{tpu_custom_call.1} parent=31 // pred_check
          %p250 = pneg %p88
        $region38: #{tpu_custom_call.1} parent=31 // pred_check_branch
          %252 = sbr.rel (%p250) target = $region40
        $region39: #{tpu_custom_call.1} parent=31 // pred_region
          %p253 = scmp.lt.s32.totalorder %s24, %s23
          %s254 = scalar_select %p253, %s24, %s23
          %s255 = smul.u32 16, %s254
          %p256 = scmp.lt.s32.totalorder %s22, 1
          %s257 = scalar_select %p256, %s22, 1
          %p258 = scmp.lt.s32.totalorder %s255, 31
          %s259 = scalar_select %p258, %s255, 31
          %s260 = smul.addr %s257, 32
          %s261 = sadd.s32 %s259, %s260
          %s262 = smul.addr %s261, 8
          %s263 = scalar_lea.vmem %s1, %s262
          %p264 = scmp.lt.s32.totalorder %s24, %s23
          %s265 = scalar_select %p264, %s24, %s23
          %s266 = smul.u32 16, %s265
        $region40: #{tpu_custom_call.1} parent=31 // pred_fallthru
          _
      $region32: #{tpu_custom_call.1} parent=5 // pred_fallthru
        _
      %p267 = scmp.le.s32.totalorder 1, %s15
      %p268 = scmp.lt.s32.totalorder %s15, 9
      %p269 = pnand %p267, %p268
      %p270 = pneg %p269
      // Predicated region
      $region41: #{tpu_custom_call.1} parent=5 // pred_check
        _
      $region42: #{tpu_custom_call.1} parent=5 // pred_check_branch
        %272 = sbr.rel (%p269) target = $region44
      $region43: #{tpu_custom_call.1} parent=5 // pred_region
        %s273 = ssub.s32 %s15, 1
        %s274 = smul.u32 16, %s26
        %p275 = scmp.lt.s32.totalorder %s25, 1
        %s276 = scalar_select %p275, %s25, 1
        %p277 = scmp.lt.s32.totalorder %s274, 31
        %s278 = scalar_select %p277, %s274, 31
        %s279 = smul.addr %s276, 32
        %s280 = sadd.s32 %s278, %s279
        %s281 = smul.addr %s280, 8
        %s282 = scalar_lea.vmem %s0, %s281
        %p283 = pneg %p62
        %p284 = pneg %p59
        %p285 = scmp.lt.s32.totalorder %s27, %s26
        %s286 = scalar_select %p285, %s27, %s26
        %s287 = smul.u32 16, %s286
        %p288 = scmp.lt.s32.totalorder %s25, 1
        %s289 = scalar_select %p288, %s25, 1
        %p290 = scmp.lt.s32.totalorder %s287, 31
        %s291 = scalar_select %p290, %s287, 31
        %s292 = smul.addr %s289, 32
        %s293 = sadd.s32 %s291, %s292
        %s294 = smul.addr %s293, 8
        %s295 = scalar_lea.vmem %s1, %s294
        %p296 = pneg %p94
        %p297 = pneg %p91
        %p298 = pneg %p115
        %p299 = pneg %p112
        %p300 = pneg %p136
        %p301 = pneg %p133
        %p302 = pneg %p157
        %p303 = pneg %p154
        %p304 = pneg %p178
        %p305 = pneg %p175
        %p306 = pneg %p206
        %p307 = pneg %p203
        %s308 = sand.u32 %s193, 1
        %s309 = scalar_lea.sflag [#allocation6], %s308
        %s310 = sand.u32 %s193, 1
        %s311 = smul.addr %s310, 16
        %s312 = scalar_lea.vmem [#allocation5], %s311
        %s313 = smul.u32 16, %s26
        %p314 = scmp.lt.s32.totalorder %s25, 1
        %s315 = scalar_select %p314, %s25, 1
        %p316 = scmp.lt.s32.totalorder %s313, 31
        %s317 = scalar_select %p316, %s313, 31
        %s318 = smul.addr %s315, 32
        %s319 = sadd.s32 %s317, %s318
        %s320 = smul.addr %s319, 8
        %s321 = scalar_lea.vmem %s0, %s320
        %s322 = smul.u32 16, %s26
        %p323 = scmp.lt.s32.totalorder %s27, %s26
        %s324 = scalar_select %p323, %s27, %s26
        %s325 = smul.u32 16, %s324
        %p326 = scmp.lt.s32.totalorder %s25, 1
        %s327 = scalar_select %p326, %s25, 1
        %p328 = scmp.lt.s32.totalorder %s325, 31
        %s329 = scalar_select %p328, %s325, 31
        %s330 = smul.addr %s327, 32
        %s331 = sadd.s32 %s329, %s330
        %s332 = smul.addr %s331, 8
        %s333 = scalar_lea.vmem %s1, %s332
        %p334 = scmp.lt.s32.totalorder %s27, %s26
        %s335 = scalar_select %p334, %s27, %s26
        %s336 = smul.u32 16, %s335
        %p337 = scmp.eq.s32.totalorder %s27, 0
        // Predicated region
        $region45: #{tpu_custom_call.1} parent=43 // pred_check
          %p338 = pneg %p337
        $region46: #{tpu_custom_call.1} parent=43 // pred_check_branch
          %340 = sbr.rel (%p338) target = $region48
        $region47: #{tpu_custom_call.1} parent=43 // pred_region
          %vm341 = vcmask 7168
          %342 = vst.msk [vmem:[#allocation2] sm:$0xff] %vm341, -1e+30
          %343 = vst.msk [vmem:[#allocation2 + $0x8] sm:$0xff] %vm341, -1e+30
          %344 = vst.msk [vmem:[#allocation2 + $0x10] sm:$0xff] %vm341, -1e+30
          %345 = vst.msk [vmem:[#allocation2 + $0x18] sm:$0xff] %vm341, -1e+30
          %346 = vst.msk [vmem:[#allocation2 + $0x20] sm:$0xff] %vm341, -1e+30
          %347 = vst.msk [vmem:[#allocation2 + $0x28] sm:$0xff] %vm341, -1e+30
          %348 = vst.msk [vmem:[#allocation2 + $0x30] sm:$0xff] %vm341, -1e+30
          %349 = vst.msk [vmem:[#allocation2 + $0x38] sm:$0xff] %vm341, -1e+30
          %350 = vst.msk [vmem:[#allocation2 + $0x40] sm:$0xff] %vm341, -1e+30
          %351 = vst.msk [vmem:[#allocation2 + $0x48] sm:$0xff] %vm341, -1e+30
          %352 = vst.msk [vmem:[#allocation2 + $0x50] sm:$0xff] %vm341, -1e+30
          %353 = vst.msk [vmem:[#allocation2 + $0x58] sm:$0xff] %vm341, -1e+30
          %354 = vst.msk [vmem:[#allocation2 + $0x60] sm:$0xff] %vm341, -1e+30
          %355 = vst.msk [vmem:[#allocation2 + $0x68] sm:$0xff] %vm341, -1e+30
          %356 = vst.msk [vmem:[#allocation2 + $0x70] sm:$0xff] %vm341, -1e+30
          %357 = vst.msk [vmem:[#allocation2 + $0x78] sm:$0xff] %vm341, -1e+30
          %358 = vst.msk [vmem:[#allocation3] sm:$0xff] %vm341, 0.0
          %359 = vst.msk [vmem:[#allocation3 + $0x8] sm:$0xff] %vm341, 0.0
          %360 = vst.msk [vmem:[#allocation3 + $0x10] sm:$0xff] %vm341, 0.0
          %361 = vst.msk [vmem:[#allocation3 + $0x18] sm:$0xff] %vm341, 0.0
          %362 = vst.msk [vmem:[#allocation3 + $0x20] sm:$0xff] %vm341, 0.0
          %363 = vst.msk [vmem:[#allocation3 + $0x28] sm:$0xff] %vm341, 0.0
          %364 = vst.msk [vmem:[#allocation3 + $0x30] sm:$0xff] %vm341, 0.0
          %365 = vst.msk [vmem:[#allocation3 + $0x38] sm:$0xff] %vm341, 0.0
          %366 = vst.msk [vmem:[#allocation3 + $0x40] sm:$0xff] %vm341, 0.0
          %367 = vst.msk [vmem:[#allocation3 + $0x48] sm:$0xff] %vm341, 0.0
          %368 = vst.msk [vmem:[#allocation3 + $0x50] sm:$0xff] %vm341, 0.0
          %369 = vst.msk [vmem:[#allocation3 + $0x58] sm:$0xff] %vm341, 0.0
          %370 = vst.msk [vmem:[#allocation3 + $0x60] sm:$0xff] %vm341, 0.0
          %371 = vst.msk [vmem:[#allocation3 + $0x68] sm:$0xff] %vm341, 0.0
          %372 = vst.msk [vmem:[#allocation3 + $0x70] sm:$0xff] %vm341, 0.0
          %373 = vst.msk [vmem:[#allocation3 + $0x78] sm:$0xff] %vm341, 0.0
          %vm374 = vcmask 130048
          %375 = vst.msk [vmem:[#allocation4] sm:$0xff] %vm374, 0.0
          %376 = vst.msk [vmem:[#allocation4 + $0x8] sm:$0xff] %vm374, 0.0
          %377 = vst.msk [vmem:[#allocation4 + $0x10] sm:$0xff] %vm374, 0.0
          %378 = vst.msk [vmem:[#allocation4 + $0x18] sm:$0xff] %vm374, 0.0
          %379 = vst.msk [vmem:[#allocation4 + $0x20] sm:$0xff] %vm374, 0.0
          %380 = vst.msk [vmem:[#allocation4 + $0x28] sm:$0xff] %vm374, 0.0
          %381 = vst.msk [vmem:[#allocation4 + $0x30] sm:$0xff] %vm374, 0.0
          %382 = vst.msk [vmem:[#allocation4 + $0x38] sm:$0xff] %vm374, 0.0
          %383 = vst.msk [vmem:[#allocation4 + $0x40] sm:$0xff] %vm374, 0.0
          %384 = vst.msk [vmem:[#allocation4 + $0x48] sm:$0xff] %vm374, 0.0
          %385 = vst.msk [vmem:[#allocation4 + $0x50] sm:$0xff] %vm374, 0.0
          %386 = vst.msk [vmem:[#allocation4 + $0x58] sm:$0xff] %vm374, 0.0
          %387 = vst.msk [vmem:[#allocation4 + $0x60] sm:$0xff] %vm374, 0.0
          %388 = vst.msk [vmem:[#allocation4 + $0x68] sm:$0xff] %vm374, 0.0
          %389 = vst.msk [vmem:[#allocation4 + $0x70] sm:$0xff] %vm374, 0.0
          %390 = vst.msk [vmem:[#allocation4 + $0x78] sm:$0xff] %vm374, 0.0
        $region48: #{tpu_custom_call.1} parent=43 // pred_fallthru
          _
        %p391 = scmp.le.s32.totalorder %s27, %s26
        // Predicated region
        $region49: #{tpu_custom_call.1} parent=43 // pred_check
          %p392 = pneg %p391
        $region50: #{tpu_custom_call.1} parent=43 // pred_check_branch
          %394 = sbr.rel (%p392) target = $region52
        $region51: #{tpu_custom_call.1} parent=43 // pred_region
          %v395 = vld [vmem:[%s321] sm:$0xff]
          %v396 = vld [vmem:[%s321 + $0x8] sm:$0xff]
          %v397 = vld [vmem:[%s321 + $0x10] sm:$0xff]
          %v398 = vld [vmem:[%s321 + $0x18] sm:$0xff]
          %v399 = vld [vmem:[%s321 + $0x20] sm:$0xff]
          %v400 = vld [vmem:[%s321 + $0x28] sm:$0xff]
          %v401 = vld [vmem:[%s321 + $0x30] sm:$0xff]
          %v402 = vld [vmem:[%s321 + $0x38] sm:$0xff]
          %v403 = vld [vmem:[%s321 + $0x40] sm:$0xff]
          %v404 = vld [vmem:[%s321 + $0x48] sm:$0xff]
          %v405 = vld [vmem:[%s321 + $0x50] sm:$0xff]
          %v406 = vld [vmem:[%s321 + $0x58] sm:$0xff]
          %v407 = vld [vmem:[%s321 + $0x60] sm:$0xff]
          %v408 = vld [vmem:[%s321 + $0x68] sm:$0xff]
          %v409 = vld [vmem:[%s321 + $0x70] sm:$0xff]
          %v410 = vld [vmem:[%s321 + $0x78] sm:$0xff]
          %v411 = vld [vmem:[%s333] sm:$0xff]
          %v412 = vld [vmem:[%s333 + $0x8] sm:$0xff]
          %v413 = vld [vmem:[%s333 + $0x10] sm:$0xff]
          %v414 = vld [vmem:[%s333 + $0x18] sm:$0xff]
          %v415 = vld [vmem:[%s333 + $0x20] sm:$0xff]
          %v416 = vld [vmem:[%s333 + $0x28] sm:$0xff]
          %v417 = vld [vmem:[%s333 + $0x30] sm:$0xff]
          %v418 = vld [vmem:[%s333 + $0x38] sm:$0xff]
          %v419 = vld [vmem:[%s333 + $0x40] sm:$0xff]
          %v420 = vld [vmem:[%s333 + $0x48] sm:$0xff]
          %v421 = vld [vmem:[%s333 + $0x50] sm:$0xff]
          %v422 = vld [vmem:[%s333 + $0x58] sm:$0xff]
          %v423 = vld [vmem:[%s333 + $0x60] sm:$0xff]
          %v424 = vld [vmem:[%s333 + $0x68] sm:$0xff]
          %v425 = vld [vmem:[%s333 + $0x70] sm:$0xff]
          %v426 = vld [vmem:[%s333 + $0x78] sm:$0xff]
          %v427 = vld [vmem:[%s2] sm:$0xff]
          %v428 = vld [vmem:[%s3] sm:$0x1]
          %v430 = vperm.slane %v428, 0
          %vm432 = vcmask 64512
          %v434 = vsel %vm432, %v395, 0
          %v437 = vsel %vm432, %v396, 0
          %v440 = vsel %vm432, %v397, 0
          %v443 = vsel %vm432, %v398, 0
          %v446 = vsel %vm432, %v399, 0
          %v449 = vsel %vm432, %v400, 0
          %v452 = vsel %vm432, %v401, 0
          %v455 = vsel %vm432, %v402, 0
          %v458 = vsel %vm432, %v403, 0
          %v461 = vsel %vm432, %v404, 0
          %v464 = vsel %vm432, %v405, 0
          %v467 = vsel %vm432, %v406, 0
          %v470 = vsel %vm432, %v407, 0
          %v473 = vsel %vm432, %v408, 0
          %v476 = vsel %vm432, %v409, 0
          %v479 = vsel %vm432, %v410, 0
          %481 = vmatpush.msra.mxu0 0.0
          %482 = vmatpush.msra.mxu0 0.0
          %483 = vmatpush.msra.mxu0 0.0
          %484 = vmatpush.msra.mxu0 0.0
          %485 = vmatpush.msra.mxu0 0.0
          %486 = vmatpush.msra.mxu0 0.0
          %487 = vmatpush.msra.mxu0 0.0
          %488 = vmatpush.msra.mxu0 0.0
          %489 = vmatpush.msra.mxu0 0.0
          %490 = vmatpush.msra.mxu0 0.0
          %491 = vmatpush.msra.mxu0 0.0
          %492 = vmatpush.msra.mxu0 0.0
          %493 = vmatpush.msra.mxu0 0.0
          %494 = vmatpush.msra.mxu0 0.0
          %495 = vmatpush.msra.mxu0 0.0
          %496 = vmatpush.msra.mxu0 %v427
          %497 = vmatmul.f32.gmra.mxu0 %v434
          %v498 = vpop.f32.mrf.mxu0
          %v499 = vadd.f32 %v430, %v498
          %500 = vmatmul.f32.gmra.mxu0 %v437
          %v501 = vpop.f32.mrf.mxu0
          %v502 = vadd.f32 %v430, %v501
          %503 = vmatmul.f32.gmra.mxu0 %v440
          %v504 = vpop.f32.mrf.mxu0
          %v505 = vadd.f32 %v430, %v504
          %506 = vmatmul.f32.gmra.mxu0 %v443
          %v507 = vpop.f32.mrf.mxu0
          %v508 = vadd.f32 %v430, %v507
          %509 = vmatmul.f32.gmra.mxu0 %v446
          %v510 = vpop.f32.mrf.mxu0
          %v511 = vadd.f32 %v430, %v510
          %512 = vmatmul.f32.gmra.mxu0 %v449
          %v513 = vpop.f32.mrf.mxu0
          %v514 = vadd.f32 %v430, %v513
          %515 = vmatmul.f32.gmra.mxu0 %v452
          %v516 = vpop.f32.mrf.mxu0
          %v517 = vadd.f32 %v430, %v516
          %518 = vmatmul.f32.gmra.mxu0 %v455
          %v519 = vpop.f32.mrf.mxu0
          %v520 = vadd.f32 %v430, %v519
          %521 = vmatmul.f32.gmra.mxu0 %v458
          %v522 = vpop.f32.mrf.mxu0
          %v523 = vadd.f32 %v430, %v522
          %524 = vmatmul.f32.gmra.mxu0 %v461
          %v525 = vpop.f32.mrf.mxu0
          %v526 = vadd.f32 %v430, %v525
          %527 = vmatmul.f32.gmra.mxu0 %v464
          %v528 = vpop.f32.mrf.mxu0
          %v529 = vadd.f32 %v430, %v528
          %530 = vmatmul.f32.gmra.mxu0 %v467
          %v531 = vpop.f32.mrf.mxu0
          %v532 = vadd.f32 %v430, %v531
          %533 = vmatmul.f32.gmra.mxu0 %v470
          %v534 = vpop.f32.mrf.mxu0
          %v535 = vadd.f32 %v430, %v534
          %536 = vmatmul.f32.gmra.mxu0 %v473
          %v537 = vpop.f32.mrf.mxu0
          %v538 = vadd.f32 %v430, %v537
          %539 = vmatmul.f32.gmra.mxu0 %v476
          %v540 = vpop.f32.mrf.mxu0
          %v541 = vadd.f32 %v430, %v540
          %542 = vmatmul.f32.gmra.mxu0 %v479
          %v543 = vpop.f32.mrf.mxu0
          %v544 = vadd.f32 %v430, %v543
          %545 = vdwg.mxu0
          %v546 = vld [vmem:[%s4] sm:$0xff]
          %v547 = vld [vmem:[%s5] sm:$0x1]
          %v549 = vperm.slane %v547, 0
          %v552 = vsel %vm432, %v411, 0
          %v555 = vsel %vm432, %v412, 0
          %v558 = vsel %vm432, %v413, 0
          %v561 = vsel %vm432, %v414, 0
          %v564 = vsel %vm432, %v415, 0
          %v567 = vsel %vm432, %v416, 0
          %v570 = vsel %vm432, %v417, 0
          %v573 = vsel %vm432, %v418, 0
          %v576 = vsel %vm432, %v419, 0
          %v579 = vsel %vm432, %v420, 0
          %v582 = vsel %vm432, %v421, 0
          %v585 = vsel %vm432, %v422, 0
          %v588 = vsel %vm432, %v423, 0
          %v591 = vsel %vm432, %v424, 0
          %v594 = vsel %vm432, %v425, 0
          %v597 = vsel %vm432, %v426, 0
          %599 = vmatpush.msra.mxu0 0.0
          %600 = vmatpush.msra.mxu0 0.0
          %601 = vmatpush.msra.mxu0 0.0
          %602 = vmatpush.msra.mxu0 0.0
          %603 = vmatpush.msra.mxu0 0.0
          %604 = vmatpush.msra.mxu0 0.0
          %605 = vmatpush.msra.mxu0 0.0
          %606 = vmatpush.msra.mxu0 0.0
          %607 = vmatpush.msra.mxu0 0.0
          %608 = vmatpush.msra.mxu0 0.0
          %609 = vmatpush.msra.mxu0 0.0
          %610 = vmatpush.msra.mxu0 0.0
          %611 = vmatpush.msra.mxu0 0.0
          %612 = vmatpush.msra.mxu0 0.0
          %613 = vmatpush.msra.mxu0 0.0
          %614 = vmatpush.msra.mxu0 %v546
          %615 = vmatmul.f32.gmra.mxu0 %v552
          %v616 = vpop.f32.mrf.mxu0
          %v617 = vadd.f32 %v549, %v616
          %618 = vmatmul.f32.gmra.mxu0 %v555
          %v619 = vpop.f32.mrf.mxu0
          %v620 = vadd.f32 %v549, %v619
          %621 = vmatmul.f32.gmra.mxu0 %v558
          %v622 = vpop.f32.mrf.mxu0
          %v623 = vadd.f32 %v549, %v622
          %624 = vmatmul.f32.gmra.mxu0 %v561
          %v625 = vpop.f32.mrf.mxu0
          %v626 = vadd.f32 %v549, %v625
          %627 = vmatmul.f32.gmra.mxu0 %v564
          %v628 = vpop.f32.mrf.mxu0
          %v629 = vadd.f32 %v549, %v628
          %630 = vmatmul.f32.gmra.mxu0 %v567
          %v631 = vpop.f32.mrf.mxu0
          %v632 = vadd.f32 %v549, %v631
          %633 = vmatmul.f32.gmra.mxu0 %v570
          %v634 = vpop.f32.mrf.mxu0
          %v635 = vadd.f32 %v549, %v634
          %636 = vmatmul.f32.gmra.mxu0 %v573
          %v637 = vpop.f32.mrf.mxu0
          %v638 = vadd.f32 %v549, %v637
          %639 = vmatmul.f32.gmra.mxu0 %v576
          %v640 = vpop.f32.mrf.mxu0
          %v641 = vadd.f32 %v549, %v640
          %642 = vmatmul.f32.gmra.mxu0 %v579
          %v643 = vpop.f32.mrf.mxu0
          %v644 = vadd.f32 %v549, %v643
          %645 = vmatmul.f32.gmra.mxu0 %v582
          %v646 = vpop.f32.mrf.mxu0
          %v647 = vadd.f32 %v549, %v646
          %648 = vmatmul.f32.gmra.mxu0 %v585
          %v649 = vpop.f32.mrf.mxu0
          %v650 = vadd.f32 %v549, %v649
          %651 = vmatmul.f32.gmra.mxu0 %v588
          %v652 = vpop.f32.mrf.mxu0
          %v653 = vadd.f32 %v549, %v652
          %654 = vmatmul.f32.gmra.mxu0 %v591
          %v655 = vpop.f32.mrf.mxu0
          %v656 = vadd.f32 %v549, %v655
          %657 = vmatmul.f32.gmra.mxu0 %v594
          %v658 = vpop.f32.mrf.mxu0
          %v659 = vadd.f32 %v549, %v658
          %660 = vmatmul.f32.gmra.mxu0 %v597
          %v661 = vpop.f32.mrf.mxu0
          %v662 = vadd.f32 %v549, %v661
          %663 = vdwg.mxu0
          %v665 = vsel %vm432, %v499, 0
          %v668 = vsel %vm432, %v502, 0
          %v671 = vsel %vm432, %v505, 0
          %v674 = vsel %vm432, %v508, 0
          %v677 = vsel %vm432, %v511, 0
          %v680 = vsel %vm432, %v514, 0
          %v683 = vsel %vm432, %v517, 0
          %v686 = vsel %vm432, %v520, 0
          %v689 = vsel %vm432, %v523, 0
          %v692 = vsel %vm432, %v526, 0
          %v695 = vsel %vm432, %v529, 0
          %v698 = vsel %vm432, %v532, 0
          %v701 = vsel %vm432, %v535, 0
          %v704 = vsel %vm432, %v538, 0
          %v707 = vsel %vm432, %v541, 0
          %v710 = vsel %vm432, %v544, 0
          %v713 = vsel %vm432, %v617, 0
          %v716 = vsel %vm432, %v620, 0
          %v719 = vsel %vm432, %v623, 0
          %v722 = vsel %vm432, %v626, 0
          %v725 = vsel %vm432, %v629, 0
          %v728 = vsel %vm432, %v632, 0
          %v731 = vsel %vm432, %v635, 0
          %v734 = vsel %vm432, %v638, 0
          %v737 = vsel %vm432, %v641, 0
          %v740 = vsel %vm432, %v644, 0
          %v743 = vsel %vm432, %v647, 0
          %v746 = vsel %vm432, %v650, 0
          %v749 = vsel %vm432, %v653, 0
          %v752 = vsel %vm432, %v656, 0
          %v755 = vsel %vm432, %v659, 0
          %v758 = vsel %vm432, %v662, 0
          %760 = vmatpush.xpose.msra.mxu0 %v758
          %761 = vmatpush.xpose.msra.mxu0 %v755
          %762 = vmatpush.xpose.msra.mxu0 %v752
          %763 = vmatpush.xpose.msra.mxu0 %v749
          %764 = vmatpush.xpose.msra.mxu0 %v746
          %765 = vmatpush.xpose.msra.mxu0 %v743
          %766 = vmatpush.xpose.msra.mxu0 %v740
          %767 = vmatpush.xpose.msra.mxu0 %v737
          %768 = vmatpush.xpose.msra.mxu0 %v734
          %769 = vmatpush.xpose.msra.mxu0 %v731
          %770 = vmatpush.xpose.msra.mxu0 %v728
          %771 = vmatpush.xpose.msra.mxu0 %v725
          %772 = vmatpush.xpose.msra.mxu0 %v722
          %773 = vmatpush.xpose.msra.mxu0 %v719
          %774 = vmatpush.xpose.msra.mxu0 %v716
          %775 = vmatpush.xpose.msra.mxu0 %v713
          %776 = vmatmul.f32.gmra.mxu0 %v665
          %v777 = vpop.f32.mrf.mxu0
          %v778 = vadd.f32 0.0, %v777
          %779 = vmatmul.f32.gmra.mxu0 %v668
          %v780 = vpop.f32.mrf.mxu0
          %v781 = vadd.f32 0.0, %v780
          %782 = vmatmul.f32.gmra.mxu0 %v671
          %v783 = vpop.f32.mrf.mxu0
          %v784 = vadd.f32 0.0, %v783
          %785 = vmatmul.f32.gmra.mxu0 %v674
          %v786 = vpop.f32.mrf.mxu0
          %v787 = vadd.f32 0.0, %v786
          %788 = vmatmul.f32.gmra.mxu0 %v677
          %v789 = vpop.f32.mrf.mxu0
          %v790 = vadd.f32 0.0, %v789
          %791 = vmatmul.f32.gmra.mxu0 %v680
          %v792 = vpop.f32.mrf.mxu0
          %v793 = vadd.f32 0.0, %v792
          %794 = vmatmul.f32.gmra.mxu0 %v683
          %v795 = vpop.f32.mrf.mxu0
          %v796 = vadd.f32 0.0, %v795
          %797 = vmatmul.f32.gmra.mxu0 %v686
          %v798 = vpop.f32.mrf.mxu0
          %v799 = vadd.f32 0.0, %v798
          %800 = vmatmul.f32.gmra.mxu0 %v689
          %v801 = vpop.f32.mrf.mxu0
          %v802 = vadd.f32 0.0, %v801
          %803 = vmatmul.f32.gmra.mxu0 %v692
          %v804 = vpop.f32.mrf.mxu0
          %v805 = vadd.f32 0.0, %v804
          %806 = vmatmul.f32.gmra.mxu0 %v695
          %v807 = vpop.f32.mrf.mxu0
          %v808 = vadd.f32 0.0, %v807
          %809 = vmatmul.f32.gmra.mxu0 %v698
          %v810 = vpop.f32.mrf.mxu0
          %v811 = vadd.f32 0.0, %v810
          %812 = vmatmul.f32.gmra.mxu0 %v701
          %v813 = vpop.f32.mrf.mxu0
          %v814 = vadd.f32 0.0, %v813
          %815 = vmatmul.f32.gmra.mxu0 %v704
          %v816 = vpop.f32.mrf.mxu0
          %v817 = vadd.f32 0.0, %v816
          %818 = vmatmul.f32.gmra.mxu0 %v707
          %v819 = vpop.f32.mrf.mxu0
          %v820 = vadd.f32 0.0, %v819
          %821 = vmatmul.f32.gmra.mxu0 %v710
          %v822 = vpop.f32.mrf.mxu0
          %v823 = vadd.f32 0.0, %v822
          %824 = vdwg.mxu0
          %v825 = vld [vmem:[#allocation2] sm:$0xff]
          %v826 = vld [vmem:[#allocation2 + $0x8] sm:$0xff]
          %v827 = vld [vmem:[#allocation2 + $0x10] sm:$0xff]
          %v828 = vld [vmem:[#allocation2 + $0x18] sm:$0xff]
          %v829 = vld [vmem:[#allocation2 + $0x20] sm:$0xff]
          %v830 = vld [vmem:[#allocation2 + $0x28] sm:$0xff]
          %v831 = vld [vmem:[#allocation2 + $0x30] sm:$0xff]
          %v832 = vld [vmem:[#allocation2 + $0x38] sm:$0xff]
          %v833 = vld [vmem:[#allocation2 + $0x40] sm:$0xff]
          %v834 = vld [vmem:[#allocation2 + $0x48] sm:$0xff]
          %v835 = vld [vmem:[#allocation2 + $0x50] sm:$0xff]
          %v836 = vld [vmem:[#allocation2 + $0x58] sm:$0xff]
          %v837 = vld [vmem:[#allocation2 + $0x60] sm:$0xff]
          %v838 = vld [vmem:[#allocation2 + $0x68] sm:$0xff]
          %v839 = vld [vmem:[#allocation2 + $0x70] sm:$0xff]
          %v840 = vld [vmem:[#allocation2 + $0x78] sm:$0xff]
          %841 = vmax.xlane.f32.xlu0 %v778
          %v842 = vpop.xlane.xlu0 %841
          %843 = vmax.xlane.f32.xlu0 %v781
          %v844 = vpop.xlane.xlu0 %843
          %845 = vmax.xlane.f32.xlu0 %v784
          %v846 = vpop.xlane.xlu0 %845
          %847 = vmax.xlane.f32.xlu0 %v787
          %v848 = vpop.xlane.xlu0 %847
          %849 = vmax.xlane.f32.xlu0 %v790
          %v850 = vpop.xlane.xlu0 %849
          %851 = vmax.xlane.f32.xlu0 %v793
          %v852 = vpop.xlane.xlu0 %851
          %853 = vmax.xlane.f32.xlu0 %v796
          %v854 = vpop.xlane.xlu0 %853
          %855 = vmax.xlane.f32.xlu0 %v799
          %v856 = vpop.xlane.xlu0 %855
          %857 = vmax.xlane.f32.xlu0 %v802
          %v858 = vpop.xlane.xlu0 %857
          %859 = vmax.xlane.f32.xlu0 %v805
          %v860 = vpop.xlane.xlu0 %859
          %861 = vmax.xlane.f32.xlu0 %v808
          %v862 = vpop.xlane.xlu0 %861
          %863 = vmax.xlane.f32.xlu0 %v811
          %v864 = vpop.xlane.xlu0 %863
          %865 = vmax.xlane.f32.xlu0 %v814
          %v866 = vpop.xlane.xlu0 %865
          %867 = vmax.xlane.f32.xlu0 %v817
          %v868 = vpop.xlane.xlu0 %867
          %869 = vmax.xlane.f32.xlu0 %v820
          %v870 = vpop.xlane.xlu0 %869
          %871 = vmax.xlane.f32.xlu0 %v823
          %v872 = vpop.xlane.xlu0 %871
          %v873 = vmax.f32 %v825, %v842
          %v874 = vmax.f32 %v826, %v844
          %v875 = vmax.f32 %v827, %v846
          %v876 = vmax.f32 %v828, %v848
          %v877 = vmax.f32 %v829, %v850
          %v878 = vmax.f32 %v830, %v852
          %v879 = vmax.f32 %v831, %v854
          %v880 = vmax.f32 %v832, %v856
          %v881 = vmax.f32 %v833, %v858
          %v882 = vmax.f32 %v834, %v860
          %v883 = vmax.f32 %v835, %v862
          %v884 = vmax.f32 %v836, %v864
          %v885 = vmax.f32 %v837, %v866
          %v886 = vmax.f32 %v838, %v868
          %v887 = vmax.f32 %v839, %v870
          %v888 = vmax.f32 %v840, %v872
          %v889 = vsub.f32 %v825, %v873
          %v890 = vsub.f32 %v826, %v874
          %v891 = vsub.f32 %v827, %v875
          %v892 = vsub.f32 %v828, %v876
          %v893 = vsub.f32 %v829, %v877
          %v894 = vsub.f32 %v830, %v878
          %v895 = vsub.f32 %v831, %v879
          %v896 = vsub.f32 %v832, %v880
          %v897 = vsub.f32 %v833, %v881
          %v898 = vsub.f32 %v834, %v882
          %v899 = vsub.f32 %v835, %v883
          %v900 = vsub.f32 %v836, %v884
          %v901 = vsub.f32 %v837, %v885
          %v902 = vsub.f32 %v838, %v886
          %v903 = vsub.f32 %v839, %v887
          %v904 = vsub.f32 %v840, %v888
          %v905 = vmul.f32 %v889, 1.442695
          %v906 = vpow.pop %v905
          %v907 = vmul.f32 %v890, 1.442695
          %v908 = vpow.pop %v907
          %v909 = vmul.f32 %v891, 1.442695
          %v910 = vpow.pop %v909
          %v911 = vmul.f32 %v892, 1.442695
          %v912 = vpow.pop %v911
          %v913 = vmul.f32 %v893, 1.442695
          %v914 = vpow.pop %v913
          %v915 = vmul.f32 %v894, 1.442695
          %v916 = vpow.pop %v915
          %v917 = vmul.f32 %v895, 1.442695
          %v918 = vpow.pop %v917
          %v919 = vmul.f32 %v896, 1.442695
          %v920 = vpow.pop %v919
          %v921 = vmul.f32 %v897, 1.442695
          %v922 = vpow.pop %v921
          %v923 = vmul.f32 %v898, 1.442695
          %v924 = vpow.pop %v923
          %v925 = vmul.f32 %v899, 1.442695
          %v926 = vpow.pop %v925
          %v927 = vmul.f32 %v900, 1.442695
          %v928 = vpow.pop %v927
          %v929 = vmul.f32 %v901, 1.442695
          %v930 = vpow.pop %v929
          %v931 = vmul.f32 %v902, 1.442695
          %v932 = vpow.pop %v931
          %v933 = vmul.f32 %v903, 1.442695
          %v934 = vpow.pop %v933
          %v935 = vmul.f32 %v904, 1.442695
          %v936 = vpow.pop %v935
          %938 = vset.pattern.permute.xlu0 0
          %939 = vperm.xlu0 %938, %v873
          %v940 = vpop.permute.xlu0 %939
          %943 = vset.pattern.permute.xlu0 0
          %944 = vperm.xlu0 %943, %v874
          %v945 = vpop.permute.xlu0 %944
          %948 = vset.pattern.permute.xlu0 0
          %949 = vperm.xlu0 %948, %v875
          %v950 = vpop.permute.xlu0 %949
          %953 = vset.pattern.permute.xlu0 0
          %954 = vperm.xlu0 %953, %v876
          %v955 = vpop.permute.xlu0 %954
          %958 = vset.pattern.permute.xlu0 0
          %959 = vperm.xlu0 %958, %v877
          %v960 = vpop.permute.xlu0 %959
          %963 = vset.pattern.permute.xlu0 0
          %964 = vperm.xlu0 %963, %v878
          %v965 = vpop.permute.xlu0 %964
          %968 = vset.pattern.permute.xlu0 0
          %969 = vperm.xlu0 %968, %v879
          %v970 = vpop.permute.xlu0 %969
          %973 = vset.pattern.permute.xlu0 0
          %974 = vperm.xlu0 %973, %v880
          %v975 = vpop.permute.xlu0 %974
          %978 = vset.pattern.permute.xlu0 0
          %979 = vperm.xlu0 %978, %v881
          %v980 = vpop.permute.xlu0 %979
          %983 = vset.pattern.permute.xlu0 0
          %984 = vperm.xlu0 %983, %v882
          %v985 = vpop.permute.xlu0 %984
          %988 = vset.pattern.permute.xlu0 0
          %989 = vperm.xlu0 %988, %v883
          %v990 = vpop.permute.xlu0 %989
          %993 = vset.pattern.permute.xlu0 0
          %994 = vperm.xlu0 %993, %v884
          %v995 = vpop.permute.xlu0 %994
          %998 = vset.pattern.permute.xlu0 0
          %999 = vperm.xlu0 %998, %v885
          %v1000 = vpop.permute.xlu0 %999
          %1003 = vset.pattern.permute.xlu0 0
          %1004 = vperm.xlu0 %1003, %v886
          %v1005 = vpop.permute.xlu0 %1004
          %1008 = vset.pattern.permute.xlu0 0
          %1009 = vperm.xlu0 %1008, %v887
          %v1010 = vpop.permute.xlu0 %1009
          %1013 = vset.pattern.permute.xlu0 0
          %1014 = vperm.xlu0 %1013, %v888
          %v1015 = vpop.permute.xlu0 %1014
          %v1017 = vsub.f32 %v778, %v940
          %v1018 = vsub.f32 %v781, %v945
          %v1019 = vsub.f32 %v784, %v950
          %v1020 = vsub.f32 %v787, %v955
          %v1021 = vsub.f32 %v790, %v960
          %v1022 = vsub.f32 %v793, %v965
          %v1023 = vsub.f32 %v796, %v970
          %v1024 = vsub.f32 %v799, %v975
          %v1025 = vsub.f32 %v802, %v980
          %v1026 = vsub.f32 %v805, %v985
          %v1027 = vsub.f32 %v808, %v990
          %v1028 = vsub.f32 %v811, %v995
          %v1029 = vsub.f32 %v814, %v1000
          %v1030 = vsub.f32 %v817, %v1005
          %v1031 = vsub.f32 %v820, %v1010
          %v1032 = vsub.f32 %v823, %v1015
          %v1033 = vmul.f32 %v1017, 1.442695
          %v1034 = vpow.pop %v1033
          %v1035 = vmul.f32 %v1018, 1.442695
          %v1036 = vpow.pop %v1035
          %v1037 = vmul.f32 %v1019, 1.442695
          %v1038 = vpow.pop %v1037
          %v1039 = vmul.f32 %v1020, 1.442695
          %v1040 = vpow.pop %v1039
          %v1041 = vmul.f32 %v1021, 1.442695
          %v1042 = vpow.pop %v1041
          %v1043 = vmul.f32 %v1022, 1.442695
          %v1044 = vpow.pop %v1043
          %v1045 = vmul.f32 %v1023, 1.442695
          %v1046 = vpow.pop %v1045
          %v1047 = vmul.f32 %v1024, 1.442695
          %v1048 = vpow.pop %v1047
          %v1049 = vmul.f32 %v1025, 1.442695
          %v1050 = vpow.pop %v1049
          %v1051 = vmul.f32 %v1026, 1.442695
          %v1052 = vpow.pop %v1051
          %v1053 = vmul.f32 %v1027, 1.442695
          %v1054 = vpow.pop %v1053
          %v1055 = vmul.f32 %v1028, 1.442695
          %v1056 = vpow.pop %v1055
          %v1057 = vmul.f32 %v1029, 1.442695
          %v1058 = vpow.pop %v1057
          %v1059 = vmul.f32 %v1030, 1.442695
          %v1060 = vpow.pop %v1059
          %v1061 = vmul.f32 %v1031, 1.442695
          %v1062 = vpow.pop %v1061
          %v1063 = vmul.f32 %v1032, 1.442695
          %v1064 = vpow.pop %v1063
          %v1065 = vlaneseq
          %v1066 = vshrl.u32 %v1065, 7
          %v1067 = vadd.s32 %v1066, 8
          %v1068 = vadd.s32 %v1066, 16
          %v1069 = vadd.s32 %v1066, 24
          %v1070 = vadd.s32 %v1066, 32
          %v1071 = vadd.s32 %v1066, 40
          %v1072 = vadd.s32 %v1066, 48
          %v1073 = vadd.s32 %v1066, 56
          %v1074 = vadd.s32 %v1066, 64
          %v1075 = vadd.s32 %v1066, 72
          %v1076 = vadd.s32 %v1066, 80
          %v1077 = vadd.s32 %v1066, 88
          %v1078 = vadd.s32 %v1066, 96
          %v1079 = vadd.s32 %v1066, 104
          %v1080 = vadd.s32 %v1066, 112
          %v1081 = vadd.s32 %v1066, 120
          %v1082 = vlaneseq
          %v1083 = vand.u32 %v1082, 127
          %s1084 = ssub.s32 %s26, %s27
          %s1085 = smul.u32 %s1084, 128
          %v1086 = vstv %s1085
          %v1087 = vadd.s32 %v1066, %v1086
          %v1088 = vadd.s32 %v1067, %v1086
          %v1089 = vadd.s32 %v1068, %v1086
          %v1090 = vadd.s32 %v1069, %v1086
          %v1091 = vadd.s32 %v1070, %v1086
          %v1092 = vadd.s32 %v1071, %v1086
          %v1093 = vadd.s32 %v1072, %v1086
          %v1094 = vadd.s32 %v1073, %v1086
          %v1095 = vadd.s32 %v1074, %v1086
          %v1096 = vadd.s32 %v1075, %v1086
          %v1097 = vadd.s32 %v1076, %v1086
          %v1098 = vadd.s32 %v1077, %v1086
          %v1099 = vadd.s32 %v1078, %v1086
          %v1100 = vadd.s32 %v1079, %v1086
          %v1101 = vadd.s32 %v1080, %v1086
          %v1102 = vadd.s32 %v1081, %v1086
          %vm1103 = vcmp.lt.s32.totalorder %v1083, %v1087
          %vm1104 = vcmp.lt.s32.totalorder %v1083, %v1088
          %vm1105 = vcmp.lt.s32.totalorder %v1083, %v1089
          %vm1106 = vcmp.lt.s32.totalorder %v1083, %v1090
          %vm1107 = vcmp.lt.s32.totalorder %v1083, %v1091
          %vm1108 = vcmp.lt.s32.totalorder %v1083, %v1092
          %vm1109 = vcmp.lt.s32.totalorder %v1083, %v1093
          %vm1110 = vcmp.lt.s32.totalorder %v1083, %v1094
          %vm1111 = vcmp.lt.s32.totalorder %v1083, %v1095
          %vm1112 = vcmp.lt.s32.totalorder %v1083, %v1096
          %vm1113 = vcmp.lt.s32.totalorder %v1083, %v1097
          %vm1114 = vcmp.lt.s32.totalorder %v1083, %v1098
          %vm1115 = vcmp.lt.s32.totalorder %v1083, %v1099
          %vm1116 = vcmp.lt.s32.totalorder %v1083, %v1100
          %vm1117 = vcmp.lt.s32.totalorder %v1083, %v1101
          %vm1118 = vcmp.lt.s32.totalorder %v1083, %v1102
          %v1119 = vsel %vm1103, %v1034, 0.0
          %v1120 = vsel %vm1104, %v1036, 0.0
          %v1121 = vsel %vm1105, %v1038, 0.0
          %v1122 = vsel %vm1106, %v1040, 0.0
          %v1123 = vsel %vm1107, %v1042, 0.0
          %v1124 = vsel %vm1108, %v1044, 0.0
          %v1125 = vsel %vm1109, %v1046, 0.0
          %v1126 = vsel %vm1110, %v1048, 0.0
          %v1127 = vsel %vm1111, %v1050, 0.0
          %v1128 = vsel %vm1112, %v1052, 0.0
          %v1129 = vsel %vm1113, %v1054, 0.0
          %v1130 = vsel %vm1114, %v1056, 0.0
          %v1131 = vsel %vm1115, %v1058, 0.0
          %v1132 = vsel %vm1116, %v1060, 0.0
          %v1133 = vsel %vm1117, %v1062, 0.0
          %v1134 = vsel %vm1118, %v1064, 0.0
          %v1135 = vld [vmem:[#allocation3] sm:$0xff]
          %v1136 = vld [vmem:[#allocation3 + $0x8] sm:$0xff]
          %v1137 = vld [vmem:[#allocation3 + $0x10] sm:$0xff]
          %v1138 = vld [vmem:[#allocation3 + $0x18] sm:$0xff]
          %v1139 = vld [vmem:[#allocation3 + $0x20] sm:$0xff]
          %v1140 = vld [vmem:[#allocation3 + $0x28] sm:$0xff]
          %v1141 = vld [vmem:[#allocation3 + $0x30] sm:$0xff]
          %v1142 = vld [vmem:[#allocation3 + $0x38] sm:$0xff]
          %v1143 = vld [vmem:[#allocation3 + $0x40] sm:$0xff]
          %v1144 = vld [vmem:[#allocation3 + $0x48] sm:$0xff]
          %v1145 = vld [vmem:[#allocation3 + $0x50] sm:$0xff]
          %v1146 = vld [vmem:[#allocation3 + $0x58] sm:$0xff]
          %v1147 = vld [vmem:[#allocation3 + $0x60] sm:$0xff]
          %v1148 = vld [vmem:[#allocation3 + $0x68] sm:$0xff]
          %v1149 = vld [vmem:[#allocation3 + $0x70] sm:$0xff]
          %v1150 = vld [vmem:[#allocation3 + $0x78] sm:$0xff]
          %v1151 = vmul.f32 %v906, %v1135
          %v1152 = vmul.f32 %v908, %v1136
          %v1153 = vmul.f32 %v910, %v1137
          %v1154 = vmul.f32 %v912, %v1138
          %v1155 = vmul.f32 %v914, %v1139
          %v1156 = vmul.f32 %v916, %v1140
          %v1157 = vmul.f32 %v918, %v1141
          %v1158 = vmul.f32 %v920, %v1142
          %v1159 = vmul.f32 %v922, %v1143
          %v1160 = vmul.f32 %v924, %v1144
          %v1161 = vmul.f32 %v926, %v1145
          %v1162 = vmul.f32 %v928, %v1146
          %v1163 = vmul.f32 %v930, %v1147
          %v1164 = vmul.f32 %v932, %v1148
          %v1165 = vmul.f32 %v934, %v1149
          %v1166 = vmul.f32 %v936, %v1150
          %1167 = vadd.xlane.f32.xlu0 %v1119
          %v1168 = vpop.xlane.xlu0 %1167
          %1169 = vadd.xlane.f32.xlu0 %v1120
          %v1170 = vpop.xlane.xlu0 %1169
          %1171 = vadd.xlane.f32.xlu0 %v1121
          %v1172 = vpop.xlane.xlu0 %1171
          %1173 = vadd.xlane.f32.xlu0 %v1122
          %v1174 = vpop.xlane.xlu0 %1173
          %1175 = vadd.xlane.f32.xlu0 %v1123
          %v1176 = vpop.xlane.xlu0 %1175
          %1177 = vadd.xlane.f32.xlu0 %v1124
          %v1178 = vpop.xlane.xlu0 %1177
          %1179 = vadd.xlane.f32.xlu0 %v1125
          %v1180 = vpop.xlane.xlu0 %1179
          %1181 = vadd.xlane.f32.xlu0 %v1126
          %v1182 = vpop.xlane.xlu0 %1181
          %1183 = vadd.xlane.f32.xlu0 %v1127
          %v1184 = vpop.xlane.xlu0 %1183
          %1185 = vadd.xlane.f32.xlu0 %v1128
          %v1186 = vpop.xlane.xlu0 %1185
          %1187 = vadd.xlane.f32.xlu0 %v1129
          %v1188 = vpop.xlane.xlu0 %1187
          %1189 = vadd.xlane.f32.xlu0 %v1130
          %v1190 = vpop.xlane.xlu0 %1189
          %1191 = vadd.xlane.f32.xlu0 %v1131
          %v1192 = vpop.xlane.xlu0 %1191
          %1193 = vadd.xlane.f32.xlu0 %v1132
          %v1194 = vpop.xlane.xlu0 %1193
          %1195 = vadd.xlane.f32.xlu0 %v1133
          %v1196 = vpop.xlane.xlu0 %1195
          %1197 = vadd.xlane.f32.xlu0 %v1134
          %v1198 = vpop.xlane.xlu0 %1197
          %v1199 = vadd.f32 %v1151, %v1168
          %v1200 = vadd.f32 %v1152, %v1170
          %v1201 = vadd.f32 %v1153, %v1172
          %v1202 = vadd.f32 %v1154, %v1174
          %v1203 = vadd.f32 %v1155, %v1176
          %v1204 = vadd.f32 %v1156, %v1178
          %v1205 = vadd.f32 %v1157, %v1180
          %v1206 = vadd.f32 %v1158, %v1182
          %v1207 = vadd.f32 %v1159, %v1184
          %v1208 = vadd.f32 %v1160, %v1186
          %v1209 = vadd.f32 %v1161, %v1188
          %v1210 = vadd.f32 %v1162, %v1190
          %v1211 = vadd.f32 %v1163, %v1192
          %v1212 = vadd.f32 %v1164, %v1194
          %v1213 = vadd.f32 %v1165, %v1196
          %v1214 = vadd.f32 %v1166, %v1198
          %vm1215 = vcmask 7168
          %1216 = vst.msk [vmem:[#allocation3] sm:$0xff] %vm1215, %v1199
          %1217 = vst.msk [vmem:[#allocation3 + $0x8] sm:$0xff] %vm1215, %v1200
          %1218 = vst.msk [vmem:[#allocation3 + $0x10] sm:$0xff] %vm1215, %v1201
          %1219 = vst.msk [vmem:[#allocation3 + $0x18] sm:$0xff] %vm1215, %v1202
          %1220 = vst.msk [vmem:[#allocation3 + $0x20] sm:$0xff] %vm1215, %v1203
          %1221 = vst.msk [vmem:[#allocation3 + $0x28] sm:$0xff] %vm1215, %v1204
          %1222 = vst.msk [vmem:[#allocation3 + $0x30] sm:$0xff] %vm1215, %v1205
          %1223 = vst.msk [vmem:[#allocation3 + $0x38] sm:$0xff] %vm1215, %v1206
          %1224 = vst.msk [vmem:[#allocation3 + $0x40] sm:$0xff] %vm1215, %v1207
          %1225 = vst.msk [vmem:[#allocation3 + $0x48] sm:$0xff] %vm1215, %v1208
          %1226 = vst.msk [vmem:[#allocation3 + $0x50] sm:$0xff] %vm1215, %v1209
          %1227 = vst.msk [vmem:[#allocation3 + $0x58] sm:$0xff] %vm1215, %v1210
          %1228 = vst.msk [vmem:[#allocation3 + $0x60] sm:$0xff] %vm1215, %v1211
          %1229 = vst.msk [vmem:[#allocation3 + $0x68] sm:$0xff] %vm1215, %v1212
          %1230 = vst.msk [vmem:[#allocation3 + $0x70] sm:$0xff] %vm1215, %v1213
          %1231 = vst.msk [vmem:[#allocation3 + $0x78] sm:$0xff] %vm1215, %v1214
          %v1232 = vld [vmem:[#allocation4] sm:$0xff]
          %v1233 = vld [vmem:[#allocation4 + $0x8] sm:$0xff]
          %v1234 = vld [vmem:[#allocation4 + $0x10] sm:$0xff]
          %v1235 = vld [vmem:[#allocation4 + $0x18] sm:$0xff]
          %v1236 = vld [vmem:[#allocation4 + $0x20] sm:$0xff]
          %v1237 = vld [vmem:[#allocation4 + $0x28] sm:$0xff]
          %v1238 = vld [vmem:[#allocation4 + $0x30] sm:$0xff]
          %v1239 = vld [vmem:[#allocation4 + $0x38] sm:$0xff]
          %v1240 = vld [vmem:[#allocation4 + $0x40] sm:$0xff]
          %v1241 = vld [vmem:[#allocation4 + $0x48] sm:$0xff]
          %v1242 = vld [vmem:[#allocation4 + $0x50] sm:$0xff]
          %v1243 = vld [vmem:[#allocation4 + $0x58] sm:$0xff]
          %v1244 = vld [vmem:[#allocation4 + $0x60] sm:$0xff]
          %v1245 = vld [vmem:[#allocation4 + $0x68] sm:$0xff]
          %v1246 = vld [vmem:[#allocation4 + $0x70] sm:$0xff]
          %v1247 = vld [vmem:[#allocation4 + $0x78] sm:$0xff]
          %1249 = vset.pattern.permute.xlu0 0
          %1250 = vperm.xlu0 %1249, %v906
          %v1251 = vpop.permute.xlu0 %1250
          %1254 = vset.pattern.permute.xlu0 0
          %1255 = vperm.xlu0 %1254, %v908
          %v1256 = vpop.permute.xlu0 %1255
          %1259 = vset.pattern.permute.xlu0 0
          %1260 = vperm.xlu0 %1259, %v910
          %v1261 = vpop.permute.xlu0 %1260
          %1264 = vset.pattern.permute.xlu0 0
          %1265 = vperm.xlu0 %1264, %v912
          %v1266 = vpop.permute.xlu0 %1265
          %1269 = vset.pattern.permute.xlu0 0
          %1270 = vperm.xlu0 %1269, %v914
          %v1271 = vpop.permute.xlu0 %1270
          %1274 = vset.pattern.permute.xlu0 0
          %1275 = vperm.xlu0 %1274, %v916
          %v1276 = vpop.permute.xlu0 %1275
          %1279 = vset.pattern.permute.xlu0 0
          %1280 = vperm.xlu0 %1279, %v918
          %v1281 = vpop.permute.xlu0 %1280
          %1284 = vset.pattern.permute.xlu0 0
          %1285 = vperm.xlu0 %1284, %v920
          %v1286 = vpop.permute.xlu0 %1285
          %1289 = vset.pattern.permute.xlu0 0
          %1290 = vperm.xlu0 %1289, %v922
          %v1291 = vpop.permute.xlu0 %1290
          %1294 = vset.pattern.permute.xlu0 0
          %1295 = vperm.xlu0 %1294, %v924
          %v1296 = vpop.permute.xlu0 %1295
          %1299 = vset.pattern.permute.xlu0 0
          %1300 = vperm.xlu0 %1299, %v926
          %v1301 = vpop.permute.xlu0 %1300
          %1304 = vset.pattern.permute.xlu0 0
          %1305 = vperm.xlu0 %1304, %v928
          %v1306 = vpop.permute.xlu0 %1305
          %1309 = vset.pattern.permute.xlu0 0
          %1310 = vperm.xlu0 %1309, %v930
          %v1311 = vpop.permute.xlu0 %1310
          %1314 = vset.pattern.permute.xlu0 0
          %1315 = vperm.xlu0 %1314, %v932
          %v1316 = vpop.permute.xlu0 %1315
          %1319 = vset.pattern.permute.xlu0 0
          %1320 = vperm.xlu0 %1319, %v934
          %v1321 = vpop.permute.xlu0 %1320
          %1324 = vset.pattern.permute.xlu0 0
          %1325 = vperm.xlu0 %1324, %v936
          %v1326 = vpop.permute.xlu0 %1325
          %v1328 = vmul.f32 %v1251, %v1232
          %v1329 = vmul.f32 %v1256, %v1233
          %v1330 = vmul.f32 %v1261, %v1234
          %v1331 = vmul.f32 %v1266, %v1235
          %v1332 = vmul.f32 %v1271, %v1236
          %v1333 = vmul.f32 %v1276, %v1237
          %v1334 = vmul.f32 %v1281, %v1238
          %v1335 = vmul.f32 %v1286, %v1239
          %v1336 = vmul.f32 %v1291, %v1240
          %v1337 = vmul.f32 %v1296, %v1241
          %v1338 = vmul.f32 %v1301, %v1242
          %v1339 = vmul.f32 %v1306, %v1243
          %v1340 = vmul.f32 %v1311, %v1244
          %v1341 = vmul.f32 %v1316, %v1245
          %v1342 = vmul.f32 %v1321, %v1246
          %v1343 = vmul.f32 %v1326, %v1247
          %v1344 = vpack.c.bf16 %v1120, %v1119
          %v1345 = vpack.c.bf16 %v1122, %v1121
          %v1346 = vpack.c.bf16 %v1124, %v1123
          %v1347 = vpack.c.bf16 %v1126, %v1125
          %v1348 = vpack.c.bf16 %v1128, %v1127
          %v1349 = vpack.c.bf16 %v1130, %v1129
          %v1350 = vpack.c.bf16 %v1132, %v1131
          %v1351 = vpack.c.bf16 %v1134, %v1133
          %v1352 = vpack.c.bf16 %v620, %v617
          %v1353 = vpack.c.bf16 %v626, %v623
          %v1354 = vpack.c.bf16 %v632, %v629
          %v1355 = vpack.c.bf16 %v638, %v635
          %v1356 = vpack.c.bf16 %v644, %v641
          %v1357 = vpack.c.bf16 %v650, %v647
          %v1358 = vpack.c.bf16 %v656, %v653
          %v1359 = vpack.c.bf16 %v662, %v659
          %1368 = vrot.lane.b32.xlu0 %v1352, 120
          %v1369 = vpop.permute.xlu0 %1368
          %1370 = vrot.lane.b32.xlu0 %v1353, 120
          %v1371 = vpop.permute.xlu0 %1370
          %1372 = vrot.lane.b32.xlu0 %v1354, 120
          %v1373 = vpop.permute.xlu0 %1372
          %1374 = vrot.lane.b32.xlu0 %v1355, 120
          %v1375 = vpop.permute.xlu0 %1374
          %1376 = vrot.lane.b32.xlu0 %v1356, 120
          %v1377 = vpop.permute.xlu0 %1376
          %1378 = vrot.lane.b32.xlu0 %v1357, 120
          %v1379 = vpop.permute.xlu0 %1378
          %1380 = vrot.lane.b32.xlu0 %v1358, 120
          %v1381 = vpop.permute.xlu0 %1380
          %1382 = vrot.lane.b32.xlu0 %v1359, 120
          %v1383 = vpop.permute.xlu0 %1382
          %1392 = vmatpush.bf16.msra.mxu0 %v1383
          %1393 = vmatpush.bf16.msra.mxu0 %v1381
          %1394 = vmatpush.bf16.msra.mxu0 %v1379
          %1395 = vmatpush.bf16.msra.mxu0 %v1377
          %1396 = vmatpush.bf16.msra.mxu0 %v1375
          %1397 = vmatpush.bf16.msra.mxu0 %v1373
          %1398 = vmatpush.bf16.msra.mxu0 %v1371
          %1399 = vmatpush.bf16.msra.mxu0 %v1369
          %1400 = vmatmul.bf16.gmra.mxu0 %v1344
          %v1401 = vpop.f32.mrf.mxu0
          %v1402 = vadd.f32 0.0, %v1401
          %v1403 = vpop.f32.mrf.mxu0
          %v1404 = vadd.f32 0.0, %v1403
          %1405 = vmatmul.bf16.gmra.mxu0 %v1345
          %v1406 = vpop.f32.mrf.mxu0
          %v1407 = vadd.f32 0.0, %v1406
          %v1408 = vpop.f32.mrf.mxu0
          %v1409 = vadd.f32 0.0, %v1408
          %1410 = vmatmul.bf16.gmra.mxu0 %v1346
          %v1411 = vpop.f32.mrf.mxu0
          %v1412 = vadd.f32 0.0, %v1411
          %v1413 = vpop.f32.mrf.mxu0
          %v1414 = vadd.f32 0.0, %v1413
          %1415 = vmatmul.bf16.gmra.mxu0 %v1347
          %v1416 = vpop.f32.mrf.mxu0
          %v1417 = vadd.f32 0.0, %v1416
          %v1418 = vpop.f32.mrf.mxu0
          %v1419 = vadd.f32 0.0, %v1418
          %1420 = vmatmul.bf16.gmra.mxu0 %v1348
          %v1421 = vpop.f32.mrf.mxu0
          %v1422 = vadd.f32 0.0, %v1421
          %v1423 = vpop.f32.mrf.mxu0
          %v1424 = vadd.f32 0.0, %v1423
          %1425 = vmatmul.bf16.gmra.mxu0 %v1349
          %v1426 = vpop.f32.mrf.mxu0
          %v1427 = vadd.f32 0.0, %v1426
          %v1428 = vpop.f32.mrf.mxu0
          %v1429 = vadd.f32 0.0, %v1428
          %1430 = vmatmul.bf16.gmra.mxu0 %v1350
          %v1431 = vpop.f32.mrf.mxu0
          %v1432 = vadd.f32 0.0, %v1431
          %v1433 = vpop.f32.mrf.mxu0
          %v1434 = vadd.f32 0.0, %v1433
          %1435 = vmatmul.bf16.gmra.mxu0 %v1351
          %v1436 = vpop.f32.mrf.mxu0
          %v1437 = vadd.f32 0.0, %v1436
          %v1438 = vpop.f32.mrf.mxu0
          %v1439 = vadd.f32 0.0, %v1438
          %1440 = vdwg.mxu0
          %v1441 = vadd.f32 %v1328, %v1402
          %v1442 = vadd.f32 %v1329, %v1404
          %v1443 = vadd.f32 %v1330, %v1407
          %v1444 = vadd.f32 %v1331, %v1409
          %v1445 = vadd.f32 %v1332, %v1412
          %v1446 = vadd.f32 %v1333, %v1414
          %v1447 = vadd.f32 %v1334, %v1417
          %v1448 = vadd.f32 %v1335, %v1419
          %v1449 = vadd.f32 %v1336, %v1422
          %v1450 = vadd.f32 %v1337, %v1424
          %v1451 = vadd.f32 %v1338, %v1427
          %v1452 = vadd.f32 %v1339, %v1429
          %v1453 = vadd.f32 %v1340, %v1432
          %v1454 = vadd.f32 %v1341, %v1434
          %v1455 = vadd.f32 %v1342, %v1437
          %v1456 = vadd.f32 %v1343, %v1439
          %vm1457 = vcmask 130048
          %1458 = vst.msk [vmem:[#allocation4] sm:$0xff] %vm1457, %v1441
          %1459 = vst.msk [vmem:[#allocation4 + $0x8] sm:$0xff] %vm1457, %v1442
          %1460 = vst.msk [vmem:[#allocation4 + $0x10] sm:$0xff] %vm1457, %v1443
          %1461 = vst.msk [vmem:[#allocation4 + $0x18] sm:$0xff] %vm1457, %v1444
          %1462 = vst.msk [vmem:[#allocation4 + $0x20] sm:$0xff] %vm1457, %v1445
          %1463 = vst.msk [vmem:[#allocation4 + $0x28] sm:$0xff] %vm1457, %v1446
          %1464 = vst.msk [vmem:[#allocation4 + $0x30] sm:$0xff] %vm1457, %v1447
          %1465 = vst.msk [vmem:[#allocation4 + $0x38] sm:$0xff] %vm1457, %v1448
          %1466 = vst.msk [vmem:[#allocation4 + $0x40] sm:$0xff] %vm1457, %v1449
          %1467 = vst.msk [vmem:[#allocation4 + $0x48] sm:$0xff] %vm1457, %v1450
          %1468 = vst.msk [vmem:[#allocation4 + $0x50] sm:$0xff] %vm1457, %v1451
          %1469 = vst.msk [vmem:[#allocation4 + $0x58] sm:$0xff] %vm1457, %v1452
          %1470 = vst.msk [vmem:[#allocation4 + $0x60] sm:$0xff] %vm1457, %v1453
          %1471 = vst.msk [vmem:[#allocation4 + $0x68] sm:$0xff] %vm1457, %v1454
          %1472 = vst.msk [vmem:[#allocation4 + $0x70] sm:$0xff] %vm1457, %v1455
          %1473 = vst.msk [vmem:[#allocation4 + $0x78] sm:$0xff] %vm1457, %v1456
          %1474 = vst.msk [vmem:[#allocation2] sm:$0xff] %vm1215, %v873
          %1475 = vst.msk [vmem:[#allocation2 + $0x8] sm:$0xff] %vm1215, %v874
          %1476 = vst.msk [vmem:[#allocation2 + $0x10] sm:$0xff] %vm1215, %v875
          %1477 = vst.msk [vmem:[#allocation2 + $0x18] sm:$0xff] %vm1215, %v876
          %1478 = vst.msk [vmem:[#allocation2 + $0x20] sm:$0xff] %vm1215, %v877
          %1479 = vst.msk [vmem:[#allocation2 + $0x28] sm:$0xff] %vm1215, %v878
          %1480 = vst.msk [vmem:[#allocation2 + $0x30] sm:$0xff] %vm1215, %v879
          %1481 = vst.msk [vmem:[#allocation2 + $0x38] sm:$0xff] %vm1215, %v880
          %1482 = vst.msk [vmem:[#allocation2 + $0x40] sm:$0xff] %vm1215, %v881
          %1483 = vst.msk [vmem:[#allocation2 + $0x48] sm:$0xff] %vm1215, %v882
          %1484 = vst.msk [vmem:[#allocation2 + $0x50] sm:$0xff] %vm1215, %v883
          %1485 = vst.msk [vmem:[#allocation2 + $0x58] sm:$0xff] %vm1215, %v884
          %1486 = vst.msk [vmem:[#allocation2 + $0x60] sm:$0xff] %vm1215, %v885
          %1487 = vst.msk [vmem:[#allocation2 + $0x68] sm:$0xff] %vm1215, %v886
          %1488 = vst.msk [vmem:[#allocation2 + $0x70] sm:$0xff] %vm1215, %v887
          %1489 = vst.msk [vmem:[#allocation2 + $0x78] sm:$0xff] %vm1215, %v888
        $region52: #{tpu_custom_call.1} parent=43 // pred_fallthru
          _
        %p1490 = scmp.eq.s32.totalorder %s27, 1
        // Predicated region
        $region53: #{tpu_custom_call.1} parent=43 // pred_check
          %p1491 = pneg %p1490
        $region54: #{tpu_custom_call.1} parent=43 // pred_check_branch
          %1493 = sbr.rel (%p1491) target = $region56
        $region55: #{tpu_custom_call.1} parent=43 // pred_region
          %v1494 = vld [vmem:[#allocation3] sm:$0xff]
          %v1495 = vld [vmem:[#allocation3 + $0x8] sm:$0xff]
          %v1496 = vld [vmem:[#allocation3 + $0x10] sm:$0xff]
          %v1497 = vld [vmem:[#allocation3 + $0x18] sm:$0xff]
          %v1498 = vld [vmem:[#allocation3 + $0x20] sm:$0xff]
          %v1499 = vld [vmem:[#allocation3 + $0x28] sm:$0xff]
          %v1500 = vld [vmem:[#allocation3 + $0x30] sm:$0xff]
          %v1501 = vld [vmem:[#allocation3 + $0x38] sm:$0xff]
          %v1502 = vld [vmem:[#allocation3 + $0x40] sm:$0xff]
          %v1503 = vld [vmem:[#allocation3 + $0x48] sm:$0xff]
          %v1504 = vld [vmem:[#allocation3 + $0x50] sm:$0xff]
          %v1505 = vld [vmem:[#allocation3 + $0x58] sm:$0xff]
          %v1506 = vld [vmem:[#allocation3 + $0x60] sm:$0xff]
          %v1507 = vld [vmem:[#allocation3 + $0x68] sm:$0xff]
          %v1508 = vld [vmem:[#allocation3 + $0x70] sm:$0xff]
          %v1509 = vld [vmem:[#allocation3 + $0x78] sm:$0xff]
          %v1510 = vmax.f32 %v1494, 1e-30
          %v1511 = vmax.f32 %v1495, 1e-30
          %v1512 = vmax.f32 %v1496, 1e-30
          %v1513 = vmax.f32 %v1497, 1e-30
          %v1514 = vmax.f32 %v1498, 1e-30
          %v1515 = vmax.f32 %v1499, 1e-30
          %v1516 = vmax.f32 %v1500, 1e-30
          %v1517 = vmax.f32 %v1501, 1e-30
          %v1518 = vmax.f32 %v1502, 1e-30
          %v1519 = vmax.f32 %v1503, 1e-30
          %v1520 = vmax.f32 %v1504, 1e-30
          %v1521 = vmax.f32 %v1505, 1e-30
          %v1522 = vmax.f32 %v1506, 1e-30
          %v1523 = vmax.f32 %v1507, 1e-30
          %v1524 = vmax.f32 %v1508, 1e-30
          %v1525 = vmax.f32 %v1509, 1e-30
          %v1526 = vrcp.pop %v1510
          %v1527 = vrcp.pop %v1511
          %v1528 = vrcp.pop %v1512
          %v1529 = vrcp.pop %v1513
          %v1530 = vrcp.pop %v1514
          %v1531 = vrcp.pop %v1515
          %v1532 = vrcp.pop %v1516
          %v1533 = vrcp.pop %v1517
          %v1534 = vrcp.pop %v1518
          %v1535 = vrcp.pop %v1519
          %v1536 = vrcp.pop %v1520
          %v1537 = vrcp.pop %v1521
          %v1538 = vrcp.pop %v1522
          %v1539 = vrcp.pop %v1523
          %v1540 = vrcp.pop %v1524
          %v1541 = vrcp.pop %v1525
          %v1542 = vld [vmem:[#allocation4] sm:$0xff]
          %v1543 = vld [vmem:[#allocation4 + $0x8] sm:$0xff]
          %v1544 = vld [vmem:[#allocation4 + $0x10] sm:$0xff]
          %v1545 = vld [vmem:[#allocation4 + $0x18] sm:$0xff]
          %v1546 = vld [vmem:[#allocation4 + $0x20] sm:$0xff]
          %v1547 = vld [vmem:[#allocation4 + $0x28] sm:$0xff]
          %v1548 = vld [vmem:[#allocation4 + $0x30] sm:$0xff]
          %v1549 = vld [vmem:[#allocation4 + $0x38] sm:$0xff]
          %v1550 = vld [vmem:[#allocation4 + $0x40] sm:$0xff]
          %v1551 = vld [vmem:[#allocation4 + $0x48] sm:$0xff]
          %v1552 = vld [vmem:[#allocation4 + $0x50] sm:$0xff]
          %v1553 = vld [vmem:[#allocation4 + $0x58] sm:$0xff]
          %v1554 = vld [vmem:[#allocation4 + $0x60] sm:$0xff]
          %v1555 = vld [vmem:[#allocation4 + $0x68] sm:$0xff]
          %v1556 = vld [vmem:[#allocation4 + $0x70] sm:$0xff]
          %v1557 = vld [vmem:[#allocation4 + $0x78] sm:$0xff]
          %1559 = vset.pattern.permute.xlu0 0
          %1560 = vperm.xlu0 %1559, %v1526
          %v1561 = vpop.permute.xlu0 %1560
          %1564 = vset.pattern.permute.xlu0 0
          %1565 = vperm.xlu0 %1564, %v1527
          %v1566 = vpop.permute.xlu0 %1565
          %1569 = vset.pattern.permute.xlu0 0
          %1570 = vperm.xlu0 %1569, %v1528
          %v1571 = vpop.permute.xlu0 %1570
          %1574 = vset.pattern.permute.xlu0 0
          %1575 = vperm.xlu0 %1574, %v1529
          %v1576 = vpop.permute.xlu0 %1575
          %1579 = vset.pattern.permute.xlu0 0
          %1580 = vperm.xlu0 %1579, %v1530
          %v1581 = vpop.permute.xlu0 %1580
          %1584 = vset.pattern.permute.xlu0 0
          %1585 = vperm.xlu0 %1584, %v1531
          %v1586 = vpop.permute.xlu0 %1585
          %1589 = vset.pattern.permute.xlu0 0
          %1590 = vperm.xlu0 %1589, %v1532
          %v1591 = vpop.permute.xlu0 %1590
          %1594 = vset.pattern.permute.xlu0 0
          %1595 = vperm.xlu0 %1594, %v1533
          %v1596 = vpop.permute.xlu0 %1595
          %1599 = vset.pattern.permute.xlu0 0
          %1600 = vperm.xlu0 %1599, %v1534
          %v1601 = vpop.permute.xlu0 %1600
          %1604 = vset.pattern.permute.xlu0 0
          %1605 = vperm.xlu0 %1604, %v1535
          %v1606 = vpop.permute.xlu0 %1605
          %1609 = vset.pattern.permute.xlu0 0
          %1610 = vperm.xlu0 %1609, %v1536
          %v1611 = vpop.permute.xlu0 %1610
          %1614 = vset.pattern.permute.xlu0 0
          %1615 = vperm.xlu0 %1614, %v1537
          %v1616 = vpop.permute.xlu0 %1615
          %1619 = vset.pattern.permute.xlu0 0
          %1620 = vperm.xlu0 %1619, %v1538
          %v1621 = vpop.permute.xlu0 %1620
          %1624 = vset.pattern.permute.xlu0 0
          %1625 = vperm.xlu0 %1624, %v1539
          %v1626 = vpop.permute.xlu0 %1625
          %1629 = vset.pattern.permute.xlu0 0
          %1630 = vperm.xlu0 %1629, %v1540
          %v1631 = vpop.permute.xlu0 %1630
          %1634 = vset.pattern.permute.xlu0 0
          %1635 = vperm.xlu0 %1634, %v1541
          %v1636 = vpop.permute.xlu0 %1635
          %v1638 = vmul.f32 %v1542, %v1561
          %v1639 = vmul.f32 %v1543, %v1566
          %v1640 = vmul.f32 %v1544, %v1571
          %v1641 = vmul.f32 %v1545, %v1576
          %v1642 = vmul.f32 %v1546, %v1581
          %v1643 = vmul.f32 %v1547, %v1586
          %v1644 = vmul.f32 %v1548, %v1591
          %v1645 = vmul.f32 %v1549, %v1596
          %v1646 = vmul.f32 %v1550, %v1601
          %v1647 = vmul.f32 %v1551, %v1606
          %v1648 = vmul.f32 %v1552, %v1611
          %v1649 = vmul.f32 %v1553, %v1616
          %v1650 = vmul.f32 %v1554, %v1621
          %v1651 = vmul.f32 %v1555, %v1626
          %v1652 = vmul.f32 %v1556, %v1631
          %v1653 = vmul.f32 %v1557, %v1636
          %1654 = vxpose.xlu0.b32.start [1/16] %v1638, 128
          %1655 = vxpose.xlu0.b32.cont [2/16] %v1639, 128
          %1656 = vxpose.xlu0.b32.cont [3/16] %v1640, 128
          %1657 = vxpose.xlu0.b32.cont [4/16] %v1641, 128
          %1658 = vxpose.xlu0.b32.cont [5/16] %v1642, 128
          %1659 = vxpose.xlu0.b32.cont [6/16] %v1643, 128
          %1660 = vxpose.xlu0.b32.cont [7/16] %v1644, 128
          %1661 = vxpose.xlu0.b32.cont [8/16] %v1645, 128
          %1662 = vxpose.xlu0.b32.cont [9/16] %v1646, 128
          %1663 = vxpose.xlu0.b32.cont [10/16] %v1647, 128
          %1664 = vxpose.xlu0.b32.cont [11/16] %v1648, 128
          %1665 = vxpose.xlu0.b32.cont [12/16] %v1649, 128
          %1666 = vxpose.xlu0.b32.cont [13/16] %v1650, 128
          %1667 = vxpose.xlu0.b32.cont [14/16] %v1651, 128
          %1668 = vxpose.xlu0.b32.cont [15/16] %v1652, 128
          %1669 = vxpose.xlu0.b32.end [16/16] %v1653, 128
          %v1670 = vpop.trf.xlu0
          %v1671 = vpop.trf.xlu0
          %v1672 = vpop.trf.xlu0
          %v1673 = vpop.trf.xlu0
          %v1674 = vpop.trf.xlu0
          %v1675 = vpop.trf.xlu0
          %v1676 = vpop.trf.xlu0
          %v1677 = vpop.trf.xlu0
          %v1678 = vpop.trf.xlu0
          %v1679 = vpop.trf.xlu0
          %v1680 = vpop.trf.xlu0
          %v1681 = vpop.trf.xlu0
          %v1682 = vpop.trf.xlu0
          %v1683 = vpop.trf.xlu0
          %v1684 = vpop.trf.xlu0
          %v1685 = vpop.trf.xlu0
          %1686 = vst [vmem:[%s312] sm:$0xff] %v1670
          %1687 = vst [vmem:[%s312 + $0x8] sm:$0xff] %v1671
        $region56: #{tpu_custom_call.1} parent=43 // pred_fallthru
          _
        %s1688 = sand.u32 %s193, 1
        %s1689 = scalar_lea.sflag [#allocation6], %s1688
        %s1690 = sand.u32 %s193, 1
        %s1691 = smul.addr %s1690, 16
        %s1692 = scalar_lea.vmem [#allocation5], %s1691
        // Predicated region
        $region57: #{tpu_custom_call.1} parent=43 // pred_check
          %p1693 = pneg %p203
        $region58: #{tpu_custom_call.1} parent=43 // pred_check_branch
          %1695 = sbr.rel (%p1693) target = $region60
        $region59: #{tpu_custom_call.1} parent=43 // pred_region
          %1697 = vsyncadd %s1689, 0
          %s1698 = smul.addr %s25, 4
          %s1699 = sadd.s32 %s26, %s1698
          %s1700 = smul.addr %s1699, 8
          %s1701 = scalar_lea.hbm %s6, %s1700
          %s1702 = sshll.u32 %s1692, 4
          %s1703 = int_to_ptr.vmem [resolvable:$true] %s1702
          %s1704 = sshll.u32 %s1701, 4
          %s1705 = int_to_ptr.hbm [resolvable:$true] %s1704
          %1710 = dma.vmem_to_hbm [thread:$0]  %s1703, 256, %s1705, %s1689, 128, 256, 8
        $region60: #{tpu_custom_call.1} parent=43 // pred_fallthru
          _
      $region44: #{tpu_custom_call.1} parent=5 // pred_fallthru
        _
      %p1711 = scmp.le.s32.totalorder 2, %s15
      // Predicated region
      $region61: #{tpu_custom_call.1} parent=5 // pred_check
        %p1712 = pneg %p1711
      $region62: #{tpu_custom_call.1} parent=5 // pred_check_branch
        %1714 = sbr.rel (%p1712) target = $region64
      $region63: #{tpu_custom_call.1} parent=5 // pred_region
        %s1715 = ssub.s32 %s15, 2
        // Predicated region
        $region65: #{tpu_custom_call.1} parent=63 // pred_check
          %p1716 = pneg %p209
        $region66: #{tpu_custom_call.1} parent=63 // pred_check_branch
          %1718 = sbr.rel (%p1716) target = $region68
        $region67: #{tpu_custom_call.1} parent=63 // pred_region
          %s1719 = sand.u32 %s194, 1
          %s1720 = scalar_lea.sflag [#allocation6], %s1719
          %s1721 = sand.u32 %s194, 1
          %s1722 = smul.addr %s1721, 16
          %s1723 = scalar_lea.vmem [#allocation5], %s1722
          %1725 = dma.done %s1720, 256
        $region68: #{tpu_custom_call.1} parent=63 // pred_fallthru
          _
      $region64: #{tpu_custom_call.1} parent=5 // pred_fallthru
        _
    $region6: #{tpu_custom_call.1} parent=1 // loop_footer
      %s19 = sadd.s32 1, %s15
    $region7: #{tpu_custom_call.1} parent=1 // loop_footer_branch
      %14 = sbr.rel target = $region3
    $region8: #{tpu_custom_call.1} parent=1 // loop_exit
      _
    %1726 = vsyncpa [#allocation6], 1
    %s1727 = scalar_lea.sflag [#allocation6], 1
    %1728 = vsyncpa %s1727, 1

</llo_original>
